<compile_context>
chip_gen: v5e
topology: v5e:2x2
jax: 0.10.0
libtpu: 0.0.40
codegen_flags: <defaults>
</compile_context>

<pallas_src>
import functools

import jax
import jax.numpy as jnp
import numpy as np
from jax.experimental import pallas as pl
from jax.experimental.pallas import tpu as pltpu


def _round_up(x, m):
    return (x + m - 1) // m * m


_VMEM = pl.BlockSpec(memory_space=pltpu.MemorySpace.VMEM)


# ----------------------------------------------------------------------------
# Fused kernel: conv3x3(pad=1) + ReLU + policy/value heads in one invocation.
# ----------------------------------------------------------------------------
def _fused_kernel(x_ref, wbd_ref, bc_ref, wh_ref, bh_ref, p_ref, v_ref, *,
                  B, Cout, A, WP, MPAD, WIN):
    # x_ref : (Cin, B*WIN)        zero-padded, spatially flattened CNHW input
    #                             x[ci, b*WIN + y*WP + x'] = xpad[b, ci, y, x']
    # wbd_ref: (Cout*B, B*9*Cin)  block-diagonal (over batch) conv weight^T
    # bc_ref : (Cout*B, 1)        conv bias, row order (c, b)
    # wh_ref : (Cout, MPAD, A+1)  fused policy|value head weight, rows permuted
    #                             to the kernel's padded-flat order, 0 at pads
    # bh_ref : (1, A+1)           fused head bias
    # p_ref  : (B, A)  policy logits        v_ref: (B, 1)  tanh value
    Cin = x_ref.shape[0]
    K9 = 9 * Cin

    # im2col ("transposed"): every 3x3 tap is just a lane-shifted slice of the
    # flattened padded input. One big matmul replaces 9 tiny K=Cin matmuls.
    taps = []
    for b in range(B):
        base = b * WIN
        for ky in range(3):
            for kx in range(3):
                s = base + ky * WP + kx
                taps.append(x_ref[:, s:s + MPAD])          # (Cin, MPAD)
    pat = jnp.concatenate(taps, axis=0)                    # (B*9*Cin, MPAD)

    # conv[c*B + b, h*WP + w] = Conv2d(x, pad=1)[b, c, h, w]; lane-dense rows.
    conv = jnp.dot(wbd_ref[...], pat, preferred_element_type=jnp.float32)
    conv = jnp.maximum(conv + bc_ref[...], 0.0)            # (Cout*B, MPAD)

    # Heads: contract over (c, m) against the flatten-permuted fused weight.
    # Reshape only splits the sublane dim (minor dim untouched).
    conv3 = conv.reshape(Cout, B, MPAD)                    # (Cout, B, MPAD)
    hd = jnp.einsum('cbm,cma->cba', conv3, wh_ref[...],
                    preferred_element_type=jnp.float32)    # (Cout, B, A+1)
    out = jnp.sum(hd, axis=0) + bh_ref[...]                # (B, A+1)

    p_ref[...] = out[:, :A]
    v_ref[...] = jnp.tanh(out[:, A:A + 1])


# ----------------------------------------------------------------------------
# One-time parameter preprocessing (fold flatten permutation / batch blocking
# into the weights so the kernel does no layout work at run time).
# ----------------------------------------------------------------------------
def prepare_params(params, H, W, batch_size):
    w_hwio, b_row, wp, bp, wv, bv = params
    Cin, Cout = w_hwio.shape[2], w_hwio.shape[3]
    A = wp.shape[1]
    B = batch_size
    HP, WP = H + 2, W + 2
    M = HP * WP
    MPAD = _round_up(M, 128)
    K9 = 9 * Cin

    # Transposed conv weight, block-diagonal over batch; row order (c, b).
    wct = w_hwio.reshape(K9, Cout).T.astype(jnp.float32)      # (Cout, 9*Cin)
    wbd = jnp.zeros((Cout * B, B * K9), jnp.float32)
    for b in range(B):
        wbd = wbd.at[b::B, b * K9:(b + 1) * K9].set(wct)
    bc = jnp.repeat(b_row.reshape(-1), B).reshape(Cout * B, 1).astype(jnp.float32)

    # Fused head weight: torch flatten order (c, h, w) -> kernel's padded-flat
    # order (c, h*WP + w); zero rows at spatial-pad / lane-pad positions.
    wh = jnp.concatenate([wp, wv], axis=1)                    # (Cout*H*W, A+1)
    wh = wh.reshape(Cout, H, W, A + 1)
    wh = jnp.pad(wh, ((0, 0), (0, HP - H), (0, WP - W), (0, 0)))
    wh = wh.reshape(Cout, M, A + 1)
    wh = jnp.pad(wh, ((0, 0), (0, MPAD - M), (0, 0))).astype(jnp.float32)
    bh = jnp.concatenate([bp, bv], axis=1).astype(jnp.float32)  # (1, A+1)

    return (wbd, bc, wh, bh)


# ----------------------------------------------------------------------------
# ModelWrapper.forward equivalent
# ----------------------------------------------------------------------------
def model_wrapper_forward(x_nchw, prepped, hidden=None):
    """ModelWrapper.forward(x, hidden) -> {'policy', 'value'} (hidden unused)."""
    del hidden
    wbd, bc, wh, bh = prepped
    B, Cin, H, W = x_nchw.shape
    Cout, MPAD, A1 = wh.shape
    A = A1 - 1
    HP, WP = H + 2, W + 2
    M = HP * WP
    WIN = MPAD + _round_up(2 * WP + 2, 128)   # per-batch lane stride (slack for taps)

    # Zero-pad spatially (padding=1), move channels to rows, flatten (b, y, x)
    # onto lanes with a fixed per-batch stride. allow_input_fusion lets XLA
    # fuse this prep into the Pallas input operand.
    xp = jnp.pad(x_nchw, ((0, 0), (0, 0), (1, 1), (1, 1)))      # (B,Cin,HP,WP)
    xp = jnp.transpose(xp, (1, 0, 2, 3)).reshape(Cin, B, M)
    xp = jnp.pad(xp, ((0, 0), (0, 0), (0, WIN - M)))
    xflat = xp.reshape(Cin, B * WIN)                            # (Cin, B*WIN)

    kernel = functools.partial(_fused_kernel, B=B, Cout=Cout, A=A,
                               WP=WP, MPAD=MPAD, WIN=WIN)
    policy, value = pl.pallas_call(
        kernel,
        out_shape=(jax.ShapeDtypeStruct((B, A), jnp.float32),
                   jax.ShapeDtypeStruct((B, 1), jnp.float32)),
        in_specs=[_VMEM] * 5,
        out_specs=(_VMEM, _VMEM),
        compiler_params=pltpu.CompilerParams(
            allow_input_fusion=[True, False, False, False, False]),
    )(xflat, wbd, bc, wh, bh)
    return {'policy': policy, 'value': value}


# ----------------------------------------------------------------------------
# Pure-JAX reference (mirrors the torch forward exactly)
# ----------------------------------------------------------------------------
def reference_forward(x_nchw, params):
    w_hwio, b_row, wp, bp, wv, bv = params
    B = x_nchw.shape[0]
    w_oihw = jnp.transpose(w_hwio, (3, 2, 0, 1))  # (Cout, Cin, 3, 3)
    conv = jax.lax.conv_general_dilated(
        x_nchw, w_oihw, window_strides=(1, 1), padding='SAME',
        dimension_numbers=('NCHW', 'OIHW', 'NCHW'))
    h = jnp.maximum(conv + b_row.reshape(1, -1, 1, 1), 0.0).reshape(B, -1)
    policy = h @ wp + bp
    value = jnp.tanh(h @ wv + bv)
    return {'policy': policy, 'value': value}


# ----------------------------------------------------------------------------
# Main
# ----------------------------------------------------------------------------
if __name__ == "__main__":
    # TODO(synk): ModelWrapper.init_hidden / .inference are host-side numpy
    # glue around forward and are not translated; only forward is kerneled.
    B, C_IN, H, W = 2, 4, 16, 16
    FILTERS, ACTIONS = 8, 4

    key = jax.random.PRNGKey(0)
    kx, kw, kb, kwp, kbp, kwv, kbv = jax.random.split(key, 7)

    x = jax.random.normal(kx, (B, C_IN, H, W), dtype=jnp.float32)

    # Deterministic synthetic parameters (torch Conv2d weight is OIHW; stored
    # here as HWIO, exactly as in the reference).
    w_hwio = 0.1 * jax.random.normal(kw, (3, 3, C_IN, FILTERS), dtype=jnp.float32)
    b_row = 0.1 * jax.random.normal(kb, (1, FILTERS), dtype=jnp.float32)
    D = FILTERS * H * W
    wp = 0.05 * jax.random.normal(kwp, (D, ACTIONS), dtype=jnp.float32)
    bp = 0.05 * jax.random.normal(kbp, (1, ACTIONS), dtype=jnp.float32)
    wv = 0.05 * jax.random.normal(kwv, (D, 1), dtype=jnp.float32)
    bv = 0.05 * jax.random.normal(kbv, (1, 1), dtype=jnp.float32)

    params = (w_hwio, b_row, wp, bp, wv, bv)
    prepped = prepare_params(params, H, W, B)   # one-time weight preprocessing

    out = jax.jit(model_wrapper_forward)(x, prepped)
    out = jax.block_until_ready(out)

    ref = reference_forward(x, params)
    np.testing.assert_allclose(np.asarray(out['policy']),
                               np.asarray(ref['policy']), rtol=1e-4, atol=1e-4)
    np.testing.assert_allclose(np.asarray(out['value']),
                               np.asarray(ref['value']), rtol=1e-4, atol=1e-4)

    print("KERNEL_OK")
</pallas_src>

<mosaic_0001>
module attributes {stable_mosaic.version = 11 : i64} {
  func.func @_fused_kernel(%arg0: memref<4x1024xf32, #tpu.memory_space<vmem>>, %arg1: memref<16x72xf32, #tpu.memory_space<vmem>>, %arg2: memref<16x1xf32, #tpu.memory_space<vmem>>, %arg3: memref<8x384x5xf32, #tpu.memory_space<vmem>>, %arg4: memref<1x5xf32, #tpu.memory_space<vmem>>, %arg5: memref<2x4xf32, #tpu.memory_space<vmem>>, %arg6: memref<2x1xf32, #tpu.memory_space<vmem>>) attributes {dimension_semantics = [], scalar_prefetch = 0 : i64, scratch_operands = 0 : i64, tpu.core_type = #tpu.core_type<tc>} {
    %c0 = arith.constant 0 : index
    %c0_0 = arith.constant 0 : index
    %0 = vector.load %arg0[%c0, %c0_0] : memref<4x1024xf32, #tpu.memory_space<vmem>>, vector<4x384xf32>
    %c0_1 = arith.constant 0 : index
    %c1 = arith.constant 1 : index
    %1 = vector.load %arg0[%c0_1, %c1] : memref<4x1024xf32, #tpu.memory_space<vmem>>, vector<4x384xf32>
    %c0_2 = arith.constant 0 : index
    %c2 = arith.constant 2 : index
    %2 = vector.load %arg0[%c0_2, %c2] : memref<4x1024xf32, #tpu.memory_space<vmem>>, vector<4x384xf32>
    %c0_3 = arith.constant 0 : index
    %c18 = arith.constant 18 : index
    %3 = vector.load %arg0[%c0_3, %c18] : memref<4x1024xf32, #tpu.memory_space<vmem>>, vector<4x384xf32>
    %c0_4 = arith.constant 0 : index
    %c19 = arith.constant 19 : index
    %4 = vector.load %arg0[%c0_4, %c19] : memref<4x1024xf32, #tpu.memory_space<vmem>>, vector<4x384xf32>
    %c0_5 = arith.constant 0 : index
    %c20 = arith.constant 20 : index
    %5 = vector.load %arg0[%c0_5, %c20] : memref<4x1024xf32, #tpu.memory_space<vmem>>, vector<4x384xf32>
    %c0_6 = arith.constant 0 : index
    %c36 = arith.constant 36 : index
    %6 = vector.load %arg0[%c0_6, %c36] : memref<4x1024xf32, #tpu.memory_space<vmem>>, vector<4x384xf32>
    %c0_7 = arith.constant 0 : index
    %c37 = arith.constant 37 : index
    %7 = vector.load %arg0[%c0_7, %c37] : memref<4x1024xf32, #tpu.memory_space<vmem>>, vector<4x384xf32>
    %c0_8 = arith.constant 0 : index
    %c38 = arith.constant 38 : index
    %8 = vector.load %arg0[%c0_8, %c38] : memref<4x1024xf32, #tpu.memory_space<vmem>>, vector<4x384xf32>
    %c0_9 = arith.constant 0 : index
    %c512 = arith.constant 512 : index
    %9 = vector.load %arg0[%c0_9, %c512] : memref<4x1024xf32, #tpu.memory_space<vmem>>, vector<4x384xf32>
    %c0_10 = arith.constant 0 : index
    %c513 = arith.constant 513 : index
    %10 = vector.load %arg0[%c0_10, %c513] : memref<4x1024xf32, #tpu.memory_space<vmem>>, vector<4x384xf32>
    %c0_11 = arith.constant 0 : index
    %c514 = arith.constant 514 : index
    %11 = vector.load %arg0[%c0_11, %c514] : memref<4x1024xf32, #tpu.memory_space<vmem>>, vector<4x384xf32>
    %c0_12 = arith.constant 0 : index
    %c530 = arith.constant 530 : index
    %12 = vector.load %arg0[%c0_12, %c530] : memref<4x1024xf32, #tpu.memory_space<vmem>>, vector<4x384xf32>
    %c0_13 = arith.constant 0 : index
    %c531 = arith.constant 531 : index
    %13 = vector.load %arg0[%c0_13, %c531] : memref<4x1024xf32, #tpu.memory_space<vmem>>, vector<4x384xf32>
    %c0_14 = arith.constant 0 : index
    %c532 = arith.constant 532 : index
    %14 = vector.load %arg0[%c0_14, %c532] : memref<4x1024xf32, #tpu.memory_space<vmem>>, vector<4x384xf32>
    %c0_15 = arith.constant 0 : index
    %c548 = arith.constant 548 : index
    %15 = vector.load %arg0[%c0_15, %c548] : memref<4x1024xf32, #tpu.memory_space<vmem>>, vector<4x384xf32>
    %c0_16 = arith.constant 0 : index
    %c549 = arith.constant 549 : index
    %16 = vector.load %arg0[%c0_16, %c549] : memref<4x1024xf32, #tpu.memory_space<vmem>>, vector<4x384xf32>
    %c0_17 = arith.constant 0 : index
    %c550 = arith.constant 550 : index
    %17 = vector.load %arg0[%c0_17, %c550] : memref<4x1024xf32, #tpu.memory_space<vmem>>, vector<4x384xf32>
    %18 = tpu.concatenate %0, %1, %2, %3, %4, %5, %6, %7, %8, %9, %10, %11, %12, %13, %14, %15 in 0 : vector<4x384xf32>, vector<4x384xf32>, vector<4x384xf32>, vector<4x384xf32>, vector<4x384xf32>, vector<4x384xf32>, vector<4x384xf32>, vector<4x384xf32>, vector<4x384xf32>, vector<4x384xf32>, vector<4x384xf32>, vector<4x384xf32>, vector<4x384xf32>, vector<4x384xf32>, vector<4x384xf32>, vector<4x384xf32> -> vector<64x384xf32>
    %19 = tpu.concatenate %16, %17 in 0 : vector<4x384xf32>, vector<4x384xf32> -> vector<8x384xf32>
    %20 = tpu.concatenate %18, %19 in 0 : vector<64x384xf32>, vector<8x384xf32> -> vector<72x384xf32>
    %c0_18 = arith.constant 0 : index
    %c0_19 = arith.constant 0 : index
    %21 = vector.load %arg1[%c0_18, %c0_19] : memref<16x72xf32, #tpu.memory_space<vmem>>, vector<16x72xf32>
    %cst = arith.constant dense<0.000000e+00> : vector<16x384xf32>
    %22 = tpu.matmul %21, %20, %cst {dimension_numbers = #tpu.dot_dimension_numbers<[1], [0], [0], [1], [0, 0, 1, 1], [], []>} : vector<16x72xf32>, vector<72x384xf32>, vector<16x384xf32> -> vector<16x384xf32>
    %c0_20 = arith.constant 0 : index
    %c0_21 = arith.constant 0 : index
    %23 = vector.load %arg2[%c0_20, %c0_21] : memref<16x1xf32, #tpu.memory_space<vmem>>, vector<16x1xf32>
    %24 = vector.broadcast %23 : vector<16x1xf32> to vector<16x384xf32>
    %25 = arith.addf %22, %24 : vector<16x384xf32>
    %cst_22 = arith.constant 0.000000e+00 : f32
    %26 = vector.broadcast %cst_22 : f32 to vector<16x384xf32>
    %27 = arith.maximumf %25, %26 : vector<16x384xf32>
    %28 = vector.shape_cast %27 : vector<16x384xf32> to vector<8x2x384xf32>
    %c0_23 = arith.constant 0 : index
    %c0_24 = arith.constant 0 : index
    %c0_25 = arith.constant 0 : index
    %29 = vector.load %arg3[%c0_23, %c0_24, %c0_25] : memref<8x384x5xf32, #tpu.memory_space<vmem>>, vector<8x384x5xf32>
    "tpu.trace_start"() <{level = 10 : i32, message = "cbm,cma->cba"}> : () -> ()
    %cst_26 = arith.constant dense<0.000000e+00> : vector<8x2x5xf32>
    %30 = tpu.matmul %28, %29, %cst_26 {dimension_numbers = #tpu.dot_dimension_numbers<[2], [1], [1], [2], [0, 0, 0, 1, 1, 2], [0], [0]>} : vector<8x2x384xf32>, vector<8x384x5xf32>, vector<8x2x5xf32> -> vector<8x2x5xf32>
    "tpu.trace_stop"() : () -> ()
    %cst_27 = arith.constant dense<0.000000e+00> : vector<2x5xf32>
    %31 = vector.multi_reduction <add>, %30, %cst_27 [0] : vector<8x2x5xf32> to vector<2x5xf32>
    %c0_28 = arith.constant 0 : index
    %c0_29 = arith.constant 0 : index
    %32 = vector.load %arg4[%c0_28, %c0_29] : memref<1x5xf32, #tpu.memory_space<vmem>>, vector<1x5xf32>
    %33 = vector.broadcast %32 : vector<1x5xf32> to vector<2x5xf32>
    %34 = arith.addf %31, %33 : vector<2x5xf32>
    %35 = vector.extract_strided_slice %34 {offsets = [0, 0], sizes = [2, 4], strides = [1, 1]} : vector<2x5xf32> to vector<2x4xf32>
    %c0_30 = arith.constant 0 : index
    %c0_31 = arith.constant 0 : index
    %36 = vector.load %arg5[%c0_30, %c0_31] : memref<2x4xf32, #tpu.memory_space<vmem>>, vector<2x4xf32>
    tpu.vector_store %arg5[%c0_30, %c0_31], %35 {strides = array<i32>} : memref<2x4xf32, #tpu.memory_space<vmem>>, vector<2x4xf32>,
    %37 = vector.extract_strided_slice %34 {offsets = [0, 4], sizes = [2, 1], strides = [1, 1]} : vector<2x5xf32> to vector<2x1xf32>
    %38 = math.tanh %37 : vector<2x1xf32>
    %c0_32 = arith.constant 0 : index
    %c0_33 = arith.constant 0 : index
    %39 = vector.load %arg6[%c0_32, %c0_33] : memref<2x1xf32, #tpu.memory_space<vmem>>, vector<2x1xf32>
    tpu.vector_store %arg6[%c0_32, %c0_33], %38 {strides = array<i32>} : memref<2x1xf32, #tpu.memory_space<vmem>>, vector<2x1xf32>,
    return
  }
}

</mosaic_0001>

<llo_original>
// kernel: model_wrapper_forward.1
$region0: #{model_wrapper_forward.1}
  #allocation0 [shape = 'u32[]', space=smem, size = 0x4, offset = 0x4, fixed_abs, tag = 'smem constant byte address 0x4 - core index']
  #allocation1 [shape = 'u32[72,128]{1,0:T(1,128)}', space=vmem, size = 0x9000, scoped, tag = 'internal scratch']
  %s0 = inlined_call_operand.vmem [shape: f32[4,1024], index: 0, kind: input, shape index: {}]
  %s1 = inlined_call_operand.vmem [shape: f32[16,72], index: 1, kind: input, shape index: {}]
  %s2 = inlined_call_operand.vmem [shape: f32[16,1], index: 2, kind: input, shape index: {}]
  %s3 = inlined_call_operand.vmem [shape: f32[8,384,5], index: 3, kind: input, shape index: {}]
  %s4 = inlined_call_operand.vmem [shape: f32[1,5], index: 4, kind: input, shape index: {}]
  %s5 = inlined_call_operand.hbm [shape: f32[2,4], index: 5, kind: output, shape index: {0}]
  %s6 = inlined_call_operand.vmem [shape: f32[2,1], index: 6, kind: output, shape index: {1}]
  %7 = xla_tuple %s5, %s6
  %s8 = sld [smem:[#allocation0]]
  $region38: #{model_wrapper_forward.1} parent=0
    _
  %s10 = ssub.s32 1, %s8
  %s11 = scalar_select 0, %s10, %s8
  $region1: #{model_wrapper_forward.1} parent=0
    #allocation2 [shape = 'u8[1024]{0}', space=vmem, size = 0x400, scoped, tag = 'output window, operand 0, single buffered']
    #allocation3 [shape = 's32[1]{0}', space=sflag, size = 0x4, scoped, tag = 'scoped memory for model_wrapper_forward.1']
    %12 = vsyncpa [#allocation3], 0
    // Predicated region
    $region2: #{model_wrapper_forward.1} parent=1 // pred_check
      _
    $region3: #{model_wrapper_forward.1} parent=1 // pred_check_branch
      %14 = sbr.rel (0) target = $region5
    $region4: #{model_wrapper_forward.1} parent=1 // pred_region
      _
    $region5: #{model_wrapper_forward.1} parent=1 // pred_fallthru
      _
    // Predicated region
    $region6: #{model_wrapper_forward.1} parent=1 // pred_check
      _
    $region7: #{model_wrapper_forward.1} parent=1 // pred_check_branch
      %16 = sbr.rel (0) target = $region9
    $region8: #{model_wrapper_forward.1} parent=1 // pred_region
      _
    $region9: #{model_wrapper_forward.1} parent=1 // pred_fallthru
      _
    // Predicated region
    $region10: #{model_wrapper_forward.1} parent=1 // pred_check
      _
    $region11: #{model_wrapper_forward.1} parent=1 // pred_check_branch
      %18 = sbr.rel (0) target = $region13
    $region12: #{model_wrapper_forward.1} parent=1 // pred_region
      _
    $region13: #{model_wrapper_forward.1} parent=1 // pred_fallthru
      _
    // Predicated region
    $region14: #{model_wrapper_forward.1} parent=1 // pred_check
      _
    $region15: #{model_wrapper_forward.1} parent=1 // pred_check_branch
      %20 = sbr.rel (0) target = $region17
    $region16: #{model_wrapper_forward.1} parent=1 // pred_region
      _
    $region17: #{model_wrapper_forward.1} parent=1 // pred_fallthru
      _
    // Predicated region
    $region18: #{model_wrapper_forward.1} parent=1 // pred_check
      _
    $region19: #{model_wrapper_forward.1} parent=1 // pred_check_branch
      %22 = sbr.rel (0) target = $region21
    $region20: #{model_wrapper_forward.1} parent=1 // pred_region
      _
    $region21: #{model_wrapper_forward.1} parent=1 // pred_fallthru
      _
    %v23 = vld [vmem:[%s0] sm:$0xff]
    %v24 = vld [vmem:[%s0 + $0x8] sm:$0xf]
    %v25 = vld [vmem:[%s0 + $0x8] sm:$0xff]
    %v26 = vld [vmem:[%s0 + $0x10] sm:$0xff]
    %v27 = vld [vmem:[%s0 + $0x18] sm:$0xf]
    %v28 = vld [vmem:[%s0 + $0x10] sm:$0xff]
    %v29 = vld [vmem:[%s0 + $0x18] sm:$0xff]
    %32 = vst [vmem:[#allocation1] ss:$2 sm:$0xff] %v23
    %s33 = scalar_lea.vmem [#allocation1], 16
    %34 = vst [vmem:[%s33] ss:$2 sm:$0xff] %v24
    %v35 = vld.sshfl [vmem:[#allocation1] sm:$0xff pattern:$0x75316420]
    %v36 = vld.sshfl [vmem:[#allocation1 + $0x8] sm:$0xff pattern:$0x75316420]
    %v37 = vld.sshfl [vmem:[#allocation1 + $0x10] sm:$0xff pattern:$0x75316420]
    %s42 = scalar_lea.vmem [#allocation1], 1
    %43 = vst [vmem:[%s42] ss:$2 sm:$0xff] %v23
    %s44 = scalar_lea.vmem [#allocation1], 17
    %45 = vst [vmem:[%s44] ss:$2 sm:$0xff] %v25
    %v46 = vld.sshfl [vmem:[#allocation1] sm:$0xff pattern:$0x75316420]
    %v47 = vld.sshfl [vmem:[#allocation1 + $0x8] sm:$0xff pattern:$0x75316420]
    %v48 = vld.sshfl [vmem:[#allocation1 + $0x10] sm:$0xff pattern:$0x75316420]
    %v49 = vld.sshfl [vmem:[#allocation1 + $0x18] sm:$0xff pattern:$0x75316420]
    %50 = vrot.lane.b32.xlu0 %v46, 127
    %v51 = vpop.permute.xlu0 %50
    %52 = vrot.lane.b32.xlu0 %v47, 127
    %v53 = vpop.permute.xlu0 %52
    %54 = vrot.lane.b32.xlu0 %v48, 127
    %v55 = vpop.permute.xlu0 %54
    %56 = vrot.lane.b32.xlu0 %v49, 127
    %v57 = vpop.permute.xlu0 %56
    %vm58 = vcmask 1039360
    %v59 = vsel %vm58, %v51, %v53
    %v60 = vsel %vm58, %v53, %v55
    %v61 = vsel %vm58, %v55, %v57
    %65 = vst [vmem:[#allocation1] ss:$2 sm:$0xff] %v23
    %s66 = scalar_lea.vmem [#allocation1], 16
    %67 = vst [vmem:[%s66] ss:$2 sm:$0xff] %v25
    %v68 = vld.sshfl [vmem:[#allocation1] sm:$0xff pattern:$0x75316420]
    %v69 = vld.sshfl [vmem:[#allocation1 + $0x8] sm:$0xff pattern:$0x75316420]
    %v70 = vld.sshfl [vmem:[#allocation1 + $0x10] sm:$0xff pattern:$0x75316420]
    %v71 = vld.sshfl [vmem:[#allocation1 + $0x18] sm:$0xff pattern:$0x75316420]
    %72 = vrot.lane.b32.xlu0 %v68, 126
    %v73 = vpop.permute.xlu0 %72
    %74 = vrot.lane.b32.xlu0 %v69, 126
    %v75 = vpop.permute.xlu0 %74
    %76 = vrot.lane.b32.xlu0 %v70, 126
    %v77 = vpop.permute.xlu0 %76
    %78 = vrot.lane.b32.xlu0 %v71, 126
    %v79 = vpop.permute.xlu0 %78
    %vm80 = vcmask 1031168
    %v81 = vsel %vm80, %v73, %v75
    %v82 = vsel %vm80, %v75, %v77
    %v83 = vsel %vm80, %v77, %v79
    %s87 = scalar_lea.vmem [#allocation1], 1
    %88 = vst [vmem:[%s87] ss:$2 sm:$0xff] %v23
    %s89 = scalar_lea.vmem [#allocation1], 17
    %90 = vst [vmem:[%s89] ss:$2 sm:$0xff] %v25
    %v91 = vld.sshfl [vmem:[#allocation1] sm:$0xff pattern:$0x75316420]
    %v92 = vld.sshfl [vmem:[#allocation1 + $0x8] sm:$0xff pattern:$0x75316420]
    %v93 = vld.sshfl [vmem:[#allocation1 + $0x10] sm:$0xff pattern:$0x75316420]
    %v94 = vld.sshfl [vmem:[#allocation1 + $0x18] sm:$0xff pattern:$0x75316420]
    %95 = vrot.lane.b32.xlu0 %v91, 110
    %v96 = vpop.permute.xlu0 %95
    %97 = vrot.lane.b32.xlu0 %v92, 110
    %v98 = vpop.permute.xlu0 %97
    %99 = vrot.lane.b32.xlu0 %v93, 110
    %v100 = vpop.permute.xlu0 %99
    %101 = vrot.lane.b32.xlu0 %v94, 110
    %v102 = vpop.permute.xlu0 %101
    %vm103 = vcmask 900096
    %v104 = vsel %vm103, %v96, %v98
    %v105 = vsel %vm103, %v98, %v100
    %v106 = vsel %vm103, %v100, %v102
    %110 = vst [vmem:[#allocation1] ss:$2 sm:$0xff] %v23
    %s111 = scalar_lea.vmem [#allocation1], 16
    %112 = vst [vmem:[%s111] ss:$2 sm:$0xff] %v25
    %v113 = vld.sshfl [vmem:[#allocation1] sm:$0xff pattern:$0x75316420]
    %v114 = vld.sshfl [vmem:[#allocation1 + $0x8] sm:$0xff pattern:$0x75316420]
    %v115 = vld.sshfl [vmem:[#allocation1 + $0x10] sm:$0xff pattern:$0x75316420]
    %v116 = vld.sshfl [vmem:[#allocation1 + $0x18] sm:$0xff pattern:$0x75316420]
    %117 = vrot.lane.b32.xlu0 %v113, 109
    %v118 = vpop.permute.xlu0 %117
    %119 = vrot.lane.b32.xlu0 %v114, 109
    %v120 = vpop.permute.xlu0 %119
    %121 = vrot.lane.b32.xlu0 %v115, 109
    %v122 = vpop.permute.xlu0 %121
    %123 = vrot.lane.b32.xlu0 %v116, 109
    %v124 = vpop.permute.xlu0 %123
    %vm125 = vcmask 891904
    %v126 = vsel %vm125, %v118, %v120
    %v127 = vsel %vm125, %v120, %v122
    %v128 = vsel %vm125, %v122, %v124
    %s132 = scalar_lea.vmem [#allocation1], 1
    %133 = vst [vmem:[%s132] ss:$2 sm:$0xff] %v23
    %s134 = scalar_lea.vmem [#allocation1], 17
    %135 = vst [vmem:[%s134] ss:$2 sm:$0xff] %v25
    %v136 = vld.sshfl [vmem:[#allocation1] sm:$0xff pattern:$0x75316420]
    %v137 = vld.sshfl [vmem:[#allocation1 + $0x8] sm:$0xff pattern:$0x75316420]
    %v138 = vld.sshfl [vmem:[#allocation1 + $0x10] sm:$0xff pattern:$0x75316420]
    %v139 = vld.sshfl [vmem:[#allocation1 + $0x18] sm:$0xff pattern:$0x75316420]
    %140 = vrot.lane.b32.xlu0 %v136, 108
    %v141 = vpop.permute.xlu0 %140
    %142 = vrot.lane.b32.xlu0 %v137, 108
    %v143 = vpop.permute.xlu0 %142
    %144 = vrot.lane.b32.xlu0 %v138, 108
    %v145 = vpop.permute.xlu0 %144
    %146 = vrot.lane.b32.xlu0 %v139, 108
    %v147 = vpop.permute.xlu0 %146
    %vm148 = vcmask 883712
    %v149 = vsel %vm148, %v141, %v143
    %v150 = vsel %vm148, %v143, %v145
    %v151 = vsel %vm148, %v145, %v147
    %155 = vst [vmem:[#allocation1] ss:$2 sm:$0xff] %v23
    %s156 = scalar_lea.vmem [#allocation1], 16
    %157 = vst [vmem:[%s156] ss:$2 sm:$0xff] %v25
    %v158 = vld.sshfl [vmem:[#allocation1] sm:$0xff pattern:$0x75316420]
    %v159 = vld.sshfl [vmem:[#allocation1 + $0x8] sm:$0xff pattern:$0x75316420]
    %v160 = vld.sshfl [vmem:[#allocation1 + $0x10] sm:$0xff pattern:$0x75316420]
    %v161 = vld.sshfl [vmem:[#allocation1 + $0x18] sm:$0xff pattern:$0x75316420]
    %162 = vrot.lane.b32.xlu0 %v158, 92
    %v163 = vpop.permute.xlu0 %162
    %164 = vrot.lane.b32.xlu0 %v159, 92
    %v165 = vpop.permute.xlu0 %164
    %166 = vrot.lane.b32.xlu0 %v160, 92
    %v167 = vpop.permute.xlu0 %166
    %168 = vrot.lane.b32.xlu0 %v161, 92
    %v169 = vpop.permute.xlu0 %168
    %vm170 = vcmask 752640
    %v171 = vsel %vm170, %v163, %v165
    %v172 = vsel %vm170, %v165, %v167
    %v173 = vsel %vm170, %v167, %v169
    %s177 = scalar_lea.vmem [#allocation1], 1
    %178 = vst [vmem:[%s177] ss:$2 sm:$0xff] %v23
    %s179 = scalar_lea.vmem [#allocation1], 17
    %180 = vst [vmem:[%s179] ss:$2 sm:$0xff] %v25
    %v181 = vld.sshfl [vmem:[#allocation1] sm:$0xff pattern:$0x75316420]
    %v182 = vld.sshfl [vmem:[#allocation1 + $0x8] sm:$0xff pattern:$0x75316420]
    %v183 = vld.sshfl [vmem:[#allocation1 + $0x10] sm:$0xff pattern:$0x75316420]
    %v184 = vld.sshfl [vmem:[#allocation1 + $0x18] sm:$0xff pattern:$0x75316420]
    %185 = vrot.lane.b32.xlu0 %v181, 91
    %v186 = vpop.permute.xlu0 %185
    %187 = vrot.lane.b32.xlu0 %v182, 91
    %v188 = vpop.permute.xlu0 %187
    %189 = vrot.lane.b32.xlu0 %v183, 91
    %v190 = vpop.permute.xlu0 %189
    %191 = vrot.lane.b32.xlu0 %v184, 91
    %v192 = vpop.permute.xlu0 %191
    %vm193 = vcmask 744448
    %v194 = vsel %vm193, %v186, %v188
    %v195 = vsel %vm193, %v188, %v190
    %v196 = vsel %vm193, %v190, %v192
    %200 = vst [vmem:[#allocation1] ss:$2 sm:$0xff] %v23
    %s201 = scalar_lea.vmem [#allocation1], 16
    %202 = vst [vmem:[%s201] ss:$2 sm:$0xff] %v25
    %v203 = vld.sshfl [vmem:[#allocation1] sm:$0xff pattern:$0x75316420]
    %v204 = vld.sshfl [vmem:[#allocation1 + $0x8] sm:$0xff pattern:$0x75316420]
    %v205 = vld.sshfl [vmem:[#allocation1 + $0x10] sm:$0xff pattern:$0x75316420]
    %v206 = vld.sshfl [vmem:[#allocation1 + $0x18] sm:$0xff pattern:$0x75316420]
    %207 = vrot.lane.b32.xlu0 %v203, 90
    %v208 = vpop.permute.xlu0 %207
    %209 = vrot.lane.b32.xlu0 %v204, 90
    %v210 = vpop.permute.xlu0 %209
    %211 = vrot.lane.b32.xlu0 %v205, 90
    %v212 = vpop.permute.xlu0 %211
    %213 = vrot.lane.b32.xlu0 %v206, 90
    %v214 = vpop.permute.xlu0 %213
    %vm215 = vcmask 736256
    %v216 = vsel %vm215, %v208, %v210
    %v217 = vsel %vm215, %v210, %v212
    %v218 = vsel %vm215, %v212, %v214
    %s224 = scalar_lea.vmem [#allocation1], 1
    %225 = vst [vmem:[%s224] ss:$2 sm:$0xff] %v26
    %s226 = scalar_lea.vmem [#allocation1], 17
    %227 = vst [vmem:[%s226] ss:$2 sm:$0xff] %v27
    %v228 = vld.sshfl [vmem:[#allocation1] sm:$0xff pattern:$0x75316420]
    %v229 = vld.sshfl [vmem:[#allocation1 + $0x8] sm:$0xff pattern:$0x75316420]
    %v230 = vld.sshfl [vmem:[#allocation1 + $0x10] sm:$0xff pattern:$0x75316420]
    %236 = vst [vmem:[#allocation1] ss:$2 sm:$0xff] %v28
    %s237 = scalar_lea.vmem [#allocation1], 16
    %238 = vst [vmem:[%s237] ss:$2 sm:$0xff] %v29
    %v239 = vld.sshfl [vmem:[#allocation1] sm:$0xff pattern:$0x75316420]
    %v240 = vld.sshfl [vmem:[#allocation1 + $0x8] sm:$0xff pattern:$0x75316420]
    %v241 = vld.sshfl [vmem:[#allocation1 + $0x10] sm:$0xff pattern:$0x75316420]
    %v242 = vld.sshfl [vmem:[#allocation1 + $0x18] sm:$0xff pattern:$0x75316420]
    %243 = vrot.lane.b32.xlu0 %v239, 127
    %v244 = vpop.permute.xlu0 %243
    %245 = vrot.lane.b32.xlu0 %v240, 127
    %v246 = vpop.permute.xlu0 %245
    %247 = vrot.lane.b32.xlu0 %v241, 127
    %v248 = vpop.permute.xlu0 %247
    %249 = vrot.lane.b32.xlu0 %v242, 127
    %v250 = vpop.permute.xlu0 %249
    %v251 = vsel %vm58, %v244, %v246
    %v252 = vsel %vm58, %v246, %v248
    %v253 = vsel %vm58, %v248, %v250
    %s257 = scalar_lea.vmem [#allocation1], 1
    %258 = vst [vmem:[%s257] ss:$2 sm:$0xff] %v28
    %s259 = scalar_lea.vmem [#allocation1], 17
    %260 = vst [vmem:[%s259] ss:$2 sm:$0xff] %v29
    %v261 = vld.sshfl [vmem:[#allocation1] sm:$0xff pattern:$0x75316420]
    %v262 = vld.sshfl [vmem:[#allocation1 + $0x8] sm:$0xff pattern:$0x75316420]
    %v263 = vld.sshfl [vmem:[#allocation1 + $0x10] sm:$0xff pattern:$0x75316420]
    %v264 = vld.sshfl [vmem:[#allocation1 + $0x18] sm:$0xff pattern:$0x75316420]
    %265 = vrot.lane.b32.xlu0 %v261, 126
    %v266 = vpop.permute.xlu0 %265
    %267 = vrot.lane.b32.xlu0 %v262, 126
    %v268 = vpop.permute.xlu0 %267
    %269 = vrot.lane.b32.xlu0 %v263, 126
    %v270 = vpop.permute.xlu0 %269
    %271 = vrot.lane.b32.xlu0 %v264, 126
    %v272 = vpop.permute.xlu0 %271
    %v273 = vsel %vm80, %v266, %v268
    %v274 = vsel %vm80, %v268, %v270
    %v275 = vsel %vm80, %v270, %v272
    %279 = vst [vmem:[#allocation1] ss:$2 sm:$0xff] %v28
    %s280 = scalar_lea.vmem [#allocation1], 16
    %281 = vst [vmem:[%s280] ss:$2 sm:$0xff] %v29
    %v282 = vld.sshfl [vmem:[#allocation1] sm:$0xff pattern:$0x75316420]
    %v283 = vld.sshfl [vmem:[#allocation1 + $0x8] sm:$0xff pattern:$0x75316420]
    %v284 = vld.sshfl [vmem:[#allocation1 + $0x10] sm:$0xff pattern:$0x75316420]
    %v285 = vld.sshfl [vmem:[#allocation1 + $0x18] sm:$0xff pattern:$0x75316420]
    %286 = vrot.lane.b32.xlu0 %v282, 110
    %v287 = vpop.permute.xlu0 %286
    %288 = vrot.lane.b32.xlu0 %v283, 110
    %v289 = vpop.permute.xlu0 %288
    %290 = vrot.lane.b32.xlu0 %v284, 110
    %v291 = vpop.permute.xlu0 %290
    %292 = vrot.lane.b32.xlu0 %v285, 110
    %v293 = vpop.permute.xlu0 %292
    %v294 = vsel %vm103, %v287, %v289
    %v295 = vsel %vm103, %v289, %v291
    %v296 = vsel %vm103, %v291, %v293
    %s300 = scalar_lea.vmem [#allocation1], 1
    %301 = vst [vmem:[%s300] ss:$2 sm:$0xff] %v28
    %s302 = scalar_lea.vmem [#allocation1], 17
    %303 = vst [vmem:[%s302] ss:$2 sm:$0xff] %v29
    %v304 = vld.sshfl [vmem:[#allocation1] sm:$0xff pattern:$0x75316420]
    %v305 = vld.sshfl [vmem:[#allocation1 + $0x8] sm:$0xff pattern:$0x75316420]
    %v306 = vld.sshfl [vmem:[#allocation1 + $0x10] sm:$0xff pattern:$0x75316420]
    %v307 = vld.sshfl [vmem:[#allocation1 + $0x18] sm:$0xff pattern:$0x75316420]
    %308 = vrot.lane.b32.xlu0 %v304, 109
    %v309 = vpop.permute.xlu0 %308
    %310 = vrot.lane.b32.xlu0 %v305, 109
    %v311 = vpop.permute.xlu0 %310
    %312 = vrot.lane.b32.xlu0 %v306, 109
    %v313 = vpop.permute.xlu0 %312
    %314 = vrot.lane.b32.xlu0 %v307, 109
    %v315 = vpop.permute.xlu0 %314
    %v316 = vsel %vm125, %v309, %v311
    %v317 = vsel %vm125, %v311, %v313
    %v318 = vsel %vm125, %v313, %v315
    %322 = vst [vmem:[#allocation1] ss:$2 sm:$0xff] %v28
    %s323 = scalar_lea.vmem [#allocation1], 16
    %324 = vst [vmem:[%s323] ss:$2 sm:$0xff] %v29
    %v325 = vld.sshfl [vmem:[#allocation1] sm:$0xff pattern:$0x75316420]
    %v326 = vld.sshfl [vmem:[#allocation1 + $0x8] sm:$0xff pattern:$0x75316420]
    %v327 = vld.sshfl [vmem:[#allocation1 + $0x10] sm:$0xff pattern:$0x75316420]
    %v328 = vld.sshfl [vmem:[#allocation1 + $0x18] sm:$0xff pattern:$0x75316420]
    %329 = vrot.lane.b32.xlu0 %v325, 108
    %v330 = vpop.permute.xlu0 %329
    %331 = vrot.lane.b32.xlu0 %v326, 108
    %v332 = vpop.permute.xlu0 %331
    %333 = vrot.lane.b32.xlu0 %v327, 108
    %v334 = vpop.permute.xlu0 %333
    %335 = vrot.lane.b32.xlu0 %v328, 108
    %v336 = vpop.permute.xlu0 %335
    %v337 = vsel %vm148, %v330, %v332
    %v338 = vsel %vm148, %v332, %v334
    %v339 = vsel %vm148, %v334, %v336
    %s343 = scalar_lea.vmem [#allocation1], 1
    %344 = vst [vmem:[%s343] ss:$2 sm:$0xff] %v28
    %s345 = scalar_lea.vmem [#allocation1], 17
    %346 = vst [vmem:[%s345] ss:$2 sm:$0xff] %v29
    %v347 = vld.sshfl [vmem:[#allocation1] sm:$0xff pattern:$0x75316420]
    %v348 = vld.sshfl [vmem:[#allocation1 + $0x8] sm:$0xff pattern:$0x75316420]
    %v349 = vld.sshfl [vmem:[#allocation1 + $0x10] sm:$0xff pattern:$0x75316420]
    %v350 = vld.sshfl [vmem:[#allocation1 + $0x18] sm:$0xff pattern:$0x75316420]
    %351 = vrot.lane.b32.xlu0 %v347, 92
    %v352 = vpop.permute.xlu0 %351
    %353 = vrot.lane.b32.xlu0 %v348, 92
    %v354 = vpop.permute.xlu0 %353
    %355 = vrot.lane.b32.xlu0 %v349, 92
    %v356 = vpop.permute.xlu0 %355
    %357 = vrot.lane.b32.xlu0 %v350, 92
    %v358 = vpop.permute.xlu0 %357
    %v359 = vsel %vm170, %v352, %v354
    %v360 = vsel %vm170, %v354, %v356
    %v361 = vsel %vm170, %v356, %v358
    %vm365 = vcmask 1043456
    %v366 = vsel %vm365, %v35, %v59
    %v367 = vsel %vm365, %v36, %v60
    %v368 = vsel %vm365, %v37, %v61
    %v369 = vsel %vm365, %v81, %v104
    %v370 = vsel %vm365, %v82, %v105
    %v371 = vsel %vm365, %v83, %v106
    %v372 = vsel %vm365, %v126, %v149
    %v373 = vsel %vm365, %v127, %v150
    %v374 = vsel %vm365, %v128, %v151
    %v375 = vsel %vm365, %v171, %v194
    %v376 = vsel %vm365, %v172, %v195
    %v377 = vsel %vm365, %v173, %v196
    %v378 = vsel %vm365, %v216, %v228
    %v379 = vsel %vm365, %v217, %v229
    %v380 = vsel %vm365, %v218, %v230
    %v381 = vsel %vm365, %v251, %v273
    %v382 = vsel %vm365, %v252, %v274
    %v383 = vsel %vm365, %v253, %v275
    %v384 = vsel %vm365, %v294, %v316
    %v385 = vsel %vm365, %v295, %v317
    %v386 = vsel %vm365, %v296, %v318
    %v387 = vsel %vm365, %v337, %v359
    %v388 = vsel %vm365, %v338, %v360
    %v389 = vsel %vm365, %v339, %v361
    %390 = vst [vmem:[#allocation1] ss:$2 sm:$0xff] %v28
    %s391 = scalar_lea.vmem [#allocation1], 16
    %392 = vst [vmem:[%s391] ss:$2 sm:$0xff] %v29
    %v393 = vld.sshfl [vmem:[#allocation1] sm:$0xff pattern:$0x75316420]
    %v394 = vld.sshfl [vmem:[#allocation1 + $0x8] sm:$0xff pattern:$0x75316420]
    %v395 = vld.sshfl [vmem:[#allocation1 + $0x10] sm:$0xff pattern:$0x75316420]
    %v396 = vld.sshfl [vmem:[#allocation1 + $0x18] sm:$0xff pattern:$0x75316420]
    %s401 = scalar_lea.vmem [#allocation1], 1
    %402 = vst [vmem:[%s401] ss:$2 sm:$0xff] %v28
    %s403 = scalar_lea.vmem [#allocation1], 17
    %404 = vst [vmem:[%s403] ss:$2 sm:$0xff] %v29
    %v405 = vld.sshfl [vmem:[#allocation1] sm:$0xff pattern:$0x75316420]
    %v406 = vld.sshfl [vmem:[#allocation1 + $0x8] sm:$0xff pattern:$0x75316420]
    %v407 = vld.sshfl [vmem:[#allocation1 + $0x10] sm:$0xff pattern:$0x75316420]
    %v408 = vld.sshfl [vmem:[#allocation1 + $0x18] sm:$0xff pattern:$0x75316420]
    %409 = vrot.lane.b32.xlu0 %v405, 127
    %v410 = vpop.permute.xlu0 %409
    %411 = vrot.lane.b32.xlu0 %v406, 127
    %v412 = vpop.permute.xlu0 %411
    %413 = vrot.lane.b32.xlu0 %v407, 127
    %v414 = vpop.permute.xlu0 %413
    %415 = vrot.lane.b32.xlu0 %v408, 127
    %v416 = vpop.permute.xlu0 %415
    %v417 = vsel %vm58, %v410, %v412
    %v418 = vsel %vm58, %v412, %v414
    %v419 = vsel %vm58, %v414, %v416
    %v424 = vsel %vm365, %v393, %v417
    %v425 = vsel %vm365, %v394, %v418
    %v426 = vsel %vm365, %v395, %v419
    %v427 = vsel %vm365, %v396, %v416
    %432 = vrot.lane.b32.xlu0 %v424, 91
    %v433 = vpop.permute.xlu0 %432
    %434 = vrot.lane.b32.xlu0 %v425, 91
    %v435 = vpop.permute.xlu0 %434
    %436 = vrot.lane.b32.xlu0 %v426, 91
    %v437 = vpop.permute.xlu0 %436
    %438 = vrot.lane.b32.xlu0 %v427, 91
    %v439 = vpop.permute.xlu0 %438
    %v440 = vsel %vm193, %v433, %v435
    %v441 = vsel %vm193, %v435, %v437
    %v442 = vsel %vm193, %v437, %v439
    %v446 = vld [vmem:[%s1] sm:$0xff]
    %v447 = vld [vmem:[%s1 + $0x8] sm:$0xff]
    %v448 = vld [vmem:[%s2] sm:$0xff]
    %v449 = vld [vmem:[%s2 + $0x8] sm:$0xff]
    %451 = vset.pattern.permute.xlu0 0
    %452 = vperm.xlu0 %451, %v448
    %v453 = vpop.permute.xlu0 %452
    %456 = vset.pattern.permute.xlu0 0
    %457 = vperm.xlu0 %456, %v449
    %v458 = vpop.permute.xlu0 %457
    %vm460 = vcmask 588800
    %v462 = vsel %vm460, %v446, 0
    %v465 = vsel %vm460, %v447, 0
    %467 = vmatpush.msra.mxu0 0.0
    %468 = vmatpush.msra.mxu0 0.0
    %469 = vmatpush.msra.mxu0 0.0
    %470 = vmatpush.msra.mxu0 0.0
    %471 = vmatpush.msra.mxu0 0.0
    %472 = vmatpush.msra.mxu0 0.0
    %473 = vmatpush.msra.mxu0 0.0
    %474 = vmatpush.msra.mxu0 %v440
    %475 = vmatpush.msra.mxu0 %v387
    %476 = vmatpush.msra.mxu0 %v384
    %477 = vmatpush.msra.mxu0 %v381
    %478 = vmatpush.msra.mxu0 %v378
    %479 = vmatpush.msra.mxu0 %v375
    %480 = vmatpush.msra.mxu0 %v372
    %481 = vmatpush.msra.mxu0 %v369
    %482 = vmatpush.msra.mxu0 %v366
    %483 = vmatmul.f32.gmra.mxu0 %v462
    %v484 = vpop.f32.mrf.mxu0
    %v485 = vadd.f32 %v453, %v484
    %486 = vmatmul.f32.gmra.mxu0 %v465
    %v487 = vpop.f32.mrf.mxu0
    %v488 = vadd.f32 %v458, %v487
    %489 = vdwg.mxu0
    %490 = vmatpush.msra.mxu0 0.0
    %491 = vmatpush.msra.mxu0 0.0
    %492 = vmatpush.msra.mxu0 0.0
    %493 = vmatpush.msra.mxu0 0.0
    %494 = vmatpush.msra.mxu0 0.0
    %495 = vmatpush.msra.mxu0 0.0
    %496 = vmatpush.msra.mxu0 0.0
    %497 = vmatpush.msra.mxu0 %v441
    %498 = vmatpush.msra.mxu0 %v388
    %499 = vmatpush.msra.mxu0 %v385
    %500 = vmatpush.msra.mxu0 %v382
    %501 = vmatpush.msra.mxu0 %v379
    %502 = vmatpush.msra.mxu0 %v376
    %503 = vmatpush.msra.mxu0 %v373
    %504 = vmatpush.msra.mxu0 %v370
    %505 = vmatpush.msra.mxu0 %v367
    %506 = vmatmul.f32.gmra.mxu0 %v462
    %v507 = vpop.f32.mrf.mxu0
    %v508 = vadd.f32 %v453, %v507
    %509 = vmatmul.f32.gmra.mxu0 %v465
    %v510 = vpop.f32.mrf.mxu0
    %v511 = vadd.f32 %v458, %v510
    %512 = vdwg.mxu0
    %513 = vmatpush.msra.mxu0 0.0
    %514 = vmatpush.msra.mxu0 0.0
    %515 = vmatpush.msra.mxu0 0.0
    %516 = vmatpush.msra.mxu0 0.0
    %517 = vmatpush.msra.mxu0 0.0
    %518 = vmatpush.msra.mxu0 0.0
    %519 = vmatpush.msra.mxu0 0.0
    %520 = vmatpush.msra.mxu0 %v442
    %521 = vmatpush.msra.mxu0 %v389
    %522 = vmatpush.msra.mxu0 %v386
    %523 = vmatpush.msra.mxu0 %v383
    %524 = vmatpush.msra.mxu0 %v380
    %525 = vmatpush.msra.mxu0 %v377
    %526 = vmatpush.msra.mxu0 %v374
    %527 = vmatpush.msra.mxu0 %v371
    %528 = vmatpush.msra.mxu0 %v368
    %529 = vmatmul.f32.gmra.mxu0 %v462
    %v530 = vpop.f32.mrf.mxu0
    %v531 = vadd.f32 %v453, %v530
    %532 = vmatmul.f32.gmra.mxu0 %v465
    %v533 = vpop.f32.mrf.mxu0
    %v534 = vadd.f32 %v458, %v533
    %535 = vdwg.mxu0
    %v536 = vmax.f32 %v485, 0.0
    %v537 = vmax.f32 %v508, 0.0
    %v538 = vmax.f32 %v531, 0.0
    %v539 = vmax.f32 %v488, 0.0
    %v540 = vmax.f32 %v511, 0.0
    %v541 = vmax.f32 %v534, 0.0
    %v548 = vrot.slane %v537, 6
    %v549 = vrot.slane %v538, 4
    %v550 = vrot.slane %v540, 6
    %v551 = vrot.slane %v541, 4
    %vm552 = vcmask 1041408
    %v553 = vsel %vm552, %v536, %v548
    %v554 = vsel %vm365, %v553, %v549
    %vm555 = vcmask 1043458
    %v556 = vsel %vm555, %v536, %v548
    %vm557 = vcmask 1045506
    %v558 = vsel %vm557, %v556, %v549
    %v559 = vrot.slane %v558, 2
    %vm560 = vcmask 1045508
    %v561 = vsel %vm560, %v536, %v548
    %v562 = vsel %vm365, %v549, %v561
    %v563 = vrot.slane %v562, 4
    %vm564 = vcmask 1045504
    %v565 = vsel %vm564, %v548, %v536
    %v566 = vsel %vm557, %v549, %v565
    %v567 = vrot.slane %v566, 6
    %v568 = vsel %vm552, %v539, %v550
    %v569 = vsel %vm365, %v568, %v551
    %v570 = vsel %vm555, %v539, %v550
    %v571 = vsel %vm557, %v570, %v551
    %v572 = vrot.slane %v571, 2
    %v573 = vsel %vm560, %v539, %v550
    %v574 = vsel %vm365, %v551, %v573
    %v575 = vrot.slane %v574, 4
    %v576 = vsel %vm564, %v550, %v539
    %v577 = vsel %vm557, %v551, %v576
    %v578 = vrot.slane %v577, 6
    %v579 = vld [vmem:[%s3] sm:$0xff]
    %v580 = vld [vmem:[%s3 + $0x8] sm:$0xff]
    %v581 = vld [vmem:[%s3 + $0x10] sm:$0xff]
    %v582 = vld [vmem:[%s3 + $0x18] sm:$0xff]
    %v583 = vld [vmem:[%s3 + $0x20] sm:$0xff]
    %v584 = vld [vmem:[%s3 + $0x28] sm:$0xff]
    %v585 = vld [vmem:[%s3 + $0x30] sm:$0xff]
    %v586 = vld [vmem:[%s3 + $0x38] sm:$0xff]
    %v587 = vld [vmem:[%s3 + $0x40] sm:$0xff]
    %v588 = vld [vmem:[%s3 + $0x48] sm:$0xff]
    %v589 = vld [vmem:[%s3 + $0x50] sm:$0xff]
    %v590 = vld [vmem:[%s3 + $0x58] sm:$0xff]
    %v591 = vld [vmem:[%s3 + $0x60] sm:$0xff]
    %v592 = vld [vmem:[%s3 + $0x68] sm:$0xff]
    %v593 = vld [vmem:[%s3 + $0x70] sm:$0xff]
    %v594 = vld [vmem:[%s3 + $0x78] sm:$0xff]
    %v595 = vld [vmem:[%s3 + $0x80] sm:$0xff]
    %v596 = vld [vmem:[%s3 + $0x88] sm:$0xff]
    %v597 = vld [vmem:[%s3 + $0x90] sm:$0xff]
    %v598 = vld [vmem:[%s3 + $0x98] sm:$0xff]
    %v599 = vld [vmem:[%s3 + $0xa0] sm:$0xff]
    %v600 = vld [vmem:[%s3 + $0xa8] sm:$0xff]
    %v601 = vld [vmem:[%s3 + $0xb0] sm:$0xff]
    %v602 = vld [vmem:[%s3 + $0xb8] sm:$0xff]
    %v603 = vld [vmem:[%s3 + $0xc0] sm:$0xff]
    %v604 = vld [vmem:[%s3 + $0xc8] sm:$0xff]
    %v605 = vld [vmem:[%s3 + $0xd0] sm:$0xff]
    %v606 = vld [vmem:[%s3 + $0xd8] sm:$0xff]
    %v607 = vld [vmem:[%s3 + $0xe0] sm:$0xff]
    %v608 = vld [vmem:[%s3 + $0xe8] sm:$0xff]
    %v609 = vld [vmem:[%s3 + $0xf0] sm:$0xff]
    %v610 = vld [vmem:[%s3 + $0xf8] sm:$0xff]
    %v611 = vld [vmem:[%s3 + $0x100] sm:$0xff]
    %v612 = vld [vmem:[%s3 + $0x108] sm:$0xff]
    %v613 = vld [vmem:[%s3 + $0x110] sm:$0xff]
    %v614 = vld [vmem:[%s3 + $0x118] sm:$0xff]
    %v615 = vld [vmem:[%s3 + $0x120] sm:$0xff]
    %v616 = vld [vmem:[%s3 + $0x128] sm:$0xff]
    %v617 = vld [vmem:[%s3 + $0x130] sm:$0xff]
    %v618 = vld [vmem:[%s3 + $0x138] sm:$0xff]
    %v619 = vld [vmem:[%s3 + $0x140] sm:$0xff]
    %v620 = vld [vmem:[%s3 + $0x148] sm:$0xff]
    %v621 = vld [vmem:[%s3 + $0x150] sm:$0xff]
    %v622 = vld [vmem:[%s3 + $0x158] sm:$0xff]
    %v623 = vld [vmem:[%s3 + $0x160] sm:$0xff]
    %v624 = vld [vmem:[%s3 + $0x168] sm:$0xff]
    %v625 = vld [vmem:[%s3 + $0x170] sm:$0xff]
    %v626 = vld [vmem:[%s3 + $0x178] sm:$0xff]
    %v627 = vld [vmem:[%s3 + $0x180] sm:$0xff]
    %v628 = vld [vmem:[%s3 + $0x188] sm:$0xff]
    %v629 = vld [vmem:[%s3 + $0x190] sm:$0xff]
    %v630 = vld [vmem:[%s3 + $0x198] sm:$0xff]
    %v631 = vld [vmem:[%s3 + $0x1a0] sm:$0xff]
    %v632 = vld [vmem:[%s3 + $0x1a8] sm:$0xff]
    %v633 = vld [vmem:[%s3 + $0x1b0] sm:$0xff]
    %v634 = vld [vmem:[%s3 + $0x1b8] sm:$0xff]
    %v635 = vld [vmem:[%s3 + $0x1c0] sm:$0xff]
    %v636 = vld [vmem:[%s3 + $0x1c8] sm:$0xff]
    %v637 = vld [vmem:[%s3 + $0x1d0] sm:$0xff]
    %v638 = vld [vmem:[%s3 + $0x1d8] sm:$0xff]
    %v639 = vld [vmem:[%s3 + $0x1e0] sm:$0xff]
    %v640 = vld [vmem:[%s3 + $0x1e8] sm:$0xff]
    %v641 = vld [vmem:[%s3 + $0x1f0] sm:$0xff]
    %v642 = vld [vmem:[%s3 + $0x1f8] sm:$0xff]
    %v643 = vld [vmem:[%s3 + $0x200] sm:$0xff]
    %v644 = vld [vmem:[%s3 + $0x208] sm:$0xff]
    %v645 = vld [vmem:[%s3 + $0x210] sm:$0xff]
    %v646 = vld [vmem:[%s3 + $0x218] sm:$0xff]
    %v647 = vld [vmem:[%s3 + $0x220] sm:$0xff]
    %v648 = vld [vmem:[%s3 + $0x228] sm:$0xff]
    %v649 = vld [vmem:[%s3 + $0x230] sm:$0xff]
    %v650 = vld [vmem:[%s3 + $0x238] sm:$0xff]
    %v651 = vld [vmem:[%s3 + $0x240] sm:$0xff]
    %v652 = vld [vmem:[%s3 + $0x248] sm:$0xff]
    %v653 = vld [vmem:[%s3 + $0x250] sm:$0xff]
    %v654 = vld [vmem:[%s3 + $0x258] sm:$0xff]
    %v655 = vld [vmem:[%s3 + $0x260] sm:$0xff]
    %v656 = vld [vmem:[%s3 + $0x268] sm:$0xff]
    %v657 = vld [vmem:[%s3 + $0x270] sm:$0xff]
    %v658 = vld [vmem:[%s3 + $0x278] sm:$0xff]
    %v659 = vld [vmem:[%s3 + $0x280] sm:$0xff]
    %v660 = vld [vmem:[%s3 + $0x288] sm:$0xff]
    %v661 = vld [vmem:[%s3 + $0x290] sm:$0xff]
    %v662 = vld [vmem:[%s3 + $0x298] sm:$0xff]
    %v663 = vld [vmem:[%s3 + $0x2a0] sm:$0xff]
    %v664 = vld [vmem:[%s3 + $0x2a8] sm:$0xff]
    %v665 = vld [vmem:[%s3 + $0x2b0] sm:$0xff]
    %v666 = vld [vmem:[%s3 + $0x2b8] sm:$0xff]
    %v667 = vld [vmem:[%s3 + $0x2c0] sm:$0xff]
    %v668 = vld [vmem:[%s3 + $0x2c8] sm:$0xff]
    %v669 = vld [vmem:[%s3 + $0x2d0] sm:$0xff]
    %v670 = vld [vmem:[%s3 + $0x2d8] sm:$0xff]
    %v671 = vld [vmem:[%s3 + $0x2e0] sm:$0xff]
    %v672 = vld [vmem:[%s3 + $0x2e8] sm:$0xff]
    %v673 = vld [vmem:[%s3 + $0x2f0] sm:$0xff]
    %v674 = vld [vmem:[%s3 + $0x2f8] sm:$0xff]
    %v675 = vld [vmem:[%s3 + $0x300] sm:$0xff]
    %v676 = vld [vmem:[%s3 + $0x308] sm:$0xff]
    %v677 = vld [vmem:[%s3 + $0x310] sm:$0xff]
    %v678 = vld [vmem:[%s3 + $0x318] sm:$0xff]
    %v679 = vld [vmem:[%s3 + $0x320] sm:$0xff]
    %v680 = vld [vmem:[%s3 + $0x328] sm:$0xff]
    %v681 = vld [vmem:[%s3 + $0x330] sm:$0xff]
    %v682 = vld [vmem:[%s3 + $0x338] sm:$0xff]
    %v683 = vld [vmem:[%s3 + $0x340] sm:$0xff]
    %v684 = vld [vmem:[%s3 + $0x348] sm:$0xff]
    %v685 = vld [vmem:[%s3 + $0x350] sm:$0xff]
    %v686 = vld [vmem:[%s3 + $0x358] sm:$0xff]
    %v687 = vld [vmem:[%s3 + $0x360] sm:$0xff]
    %v688 = vld [vmem:[%s3 + $0x368] sm:$0xff]
    %v689 = vld [vmem:[%s3 + $0x370] sm:$0xff]
    %v690 = vld [vmem:[%s3 + $0x378] sm:$0xff]
    %v691 = vld [vmem:[%s3 + $0x380] sm:$0xff]
    %v692 = vld [vmem:[%s3 + $0x388] sm:$0xff]
    %v693 = vld [vmem:[%s3 + $0x390] sm:$0xff]
    %v694 = vld [vmem:[%s3 + $0x398] sm:$0xff]
    %v695 = vld [vmem:[%s3 + $0x3a0] sm:$0xff]
    %v696 = vld [vmem:[%s3 + $0x3a8] sm:$0xff]
    %v697 = vld [vmem:[%s3 + $0x3b0] sm:$0xff]
    %v698 = vld [vmem:[%s3 + $0x3b8] sm:$0xff]
    %v699 = vld [vmem:[%s3 + $0x3c0] sm:$0xff]
    %v700 = vld [vmem:[%s3 + $0x3c8] sm:$0xff]
    %v701 = vld [vmem:[%s3 + $0x3d0] sm:$0xff]
    %v702 = vld [vmem:[%s3 + $0x3d8] sm:$0xff]
    %v703 = vld [vmem:[%s3 + $0x3e0] sm:$0xff]
    %v704 = vld [vmem:[%s3 + $0x3e8] sm:$0xff]
    %v705 = vld [vmem:[%s3 + $0x3f0] sm:$0xff]
    %v706 = vld [vmem:[%s3 + $0x3f8] sm:$0xff]
    %v707 = vld [vmem:[%s3 + $0x400] sm:$0xff]
    %v708 = vld [vmem:[%s3 + $0x408] sm:$0xff]
    %v709 = vld [vmem:[%s3 + $0x410] sm:$0xff]
    %v710 = vld [vmem:[%s3 + $0x418] sm:$0xff]
    %v711 = vld [vmem:[%s3 + $0x420] sm:$0xff]
    %v712 = vld [vmem:[%s3 + $0x428] sm:$0xff]
    %v713 = vld [vmem:[%s3 + $0x430] sm:$0xff]
    %v714 = vld [vmem:[%s3 + $0x438] sm:$0xff]
    %v715 = vld [vmem:[%s3 + $0x440] sm:$0xff]
    %v716 = vld [vmem:[%s3 + $0x448] sm:$0xff]
    %v717 = vld [vmem:[%s3 + $0x450] sm:$0xff]
    %v718 = vld [vmem:[%s3 + $0x458] sm:$0xff]
    %v719 = vld [vmem:[%s3 + $0x460] sm:$0xff]
    %v720 = vld [vmem:[%s3 + $0x468] sm:$0xff]
    %v721 = vld [vmem:[%s3 + $0x470] sm:$0xff]
    %v722 = vld [vmem:[%s3 + $0x478] sm:$0xff]
    %v723 = vld [vmem:[%s3 + $0x480] sm:$0xff]
    %v724 = vld [vmem:[%s3 + $0x488] sm:$0xff]
    %v725 = vld [vmem:[%s3 + $0x490] sm:$0xff]
    %v726 = vld [vmem:[%s3 + $0x498] sm:$0xff]
    %v727 = vld [vmem:[%s3 + $0x4a0] sm:$0xff]
    %v728 = vld [vmem:[%s3 + $0x4a8] sm:$0xff]
    %v729 = vld [vmem:[%s3 + $0x4b0] sm:$0xff]
    %v730 = vld [vmem:[%s3 + $0x4b8] sm:$0xff]
    %v731 = vld [vmem:[%s3 + $0x4c0] sm:$0xff]
    %v732 = vld [vmem:[%s3 + $0x4c8] sm:$0xff]
    %v733 = vld [vmem:[%s3 + $0x4d0] sm:$0xff]
    %v734 = vld [vmem:[%s3 + $0x4d8] sm:$0xff]
    %v735 = vld [vmem:[%s3 + $0x4e0] sm:$0xff]
    %v736 = vld [vmem:[%s3 + $0x4e8] sm:$0xff]
    %v737 = vld [vmem:[%s3 + $0x4f0] sm:$0xff]
    %v738 = vld [vmem:[%s3 + $0x4f8] sm:$0xff]
    %v739 = vld [vmem:[%s3 + $0x500] sm:$0xff]
    %v740 = vld [vmem:[%s3 + $0x508] sm:$0xff]
    %v741 = vld [vmem:[%s3 + $0x510] sm:$0xff]
    %v742 = vld [vmem:[%s3 + $0x518] sm:$0xff]
    %v743 = vld [vmem:[%s3 + $0x520] sm:$0xff]
    %v744 = vld [vmem:[%s3 + $0x528] sm:$0xff]
    %v745 = vld [vmem:[%s3 + $0x530] sm:$0xff]
    %v746 = vld [vmem:[%s3 + $0x538] sm:$0xff]
    %v747 = vld [vmem:[%s3 + $0x540] sm:$0xff]
    %v748 = vld [vmem:[%s3 + $0x548] sm:$0xff]
    %v749 = vld [vmem:[%s3 + $0x550] sm:$0xff]
    %v750 = vld [vmem:[%s3 + $0x558] sm:$0xff]
    %v751 = vld [vmem:[%s3 + $0x560] sm:$0xff]
    %v752 = vld [vmem:[%s3 + $0x568] sm:$0xff]
    %v753 = vld [vmem:[%s3 + $0x570] sm:$0xff]
    %v754 = vld [vmem:[%s3 + $0x578] sm:$0xff]
    %v755 = vld [vmem:[%s3 + $0x580] sm:$0xff]
    %v756 = vld [vmem:[%s3 + $0x588] sm:$0xff]
    %v757 = vld [vmem:[%s3 + $0x590] sm:$0xff]
    %v758 = vld [vmem:[%s3 + $0x598] sm:$0xff]
    %v759 = vld [vmem:[%s3 + $0x5a0] sm:$0xff]
    %v760 = vld [vmem:[%s3 + $0x5a8] sm:$0xff]
    %v761 = vld [vmem:[%s3 + $0x5b0] sm:$0xff]
    %v762 = vld [vmem:[%s3 + $0x5b8] sm:$0xff]
    %v763 = vld [vmem:[%s3 + $0x5c0] sm:$0xff]
    %v764 = vld [vmem:[%s3 + $0x5c8] sm:$0xff]
    %v765 = vld [vmem:[%s3 + $0x5d0] sm:$0xff]
    %v766 = vld [vmem:[%s3 + $0x5d8] sm:$0xff]
    %v767 = vld [vmem:[%s3 + $0x5e0] sm:$0xff]
    %v768 = vld [vmem:[%s3 + $0x5e8] sm:$0xff]
    %v769 = vld [vmem:[%s3 + $0x5f0] sm:$0xff]
    %v770 = vld [vmem:[%s3 + $0x5f8] sm:$0xff]
    %v771 = vld [vmem:[%s3 + $0x600] sm:$0xff]
    %v772 = vld [vmem:[%s3 + $0x608] sm:$0xff]
    %v773 = vld [vmem:[%s3 + $0x610] sm:$0xff]
    %v774 = vld [vmem:[%s3 + $0x618] sm:$0xff]
    %v775 = vld [vmem:[%s3 + $0x620] sm:$0xff]
    %v776 = vld [vmem:[%s3 + $0x628] sm:$0xff]
    %v777 = vld [vmem:[%s3 + $0x630] sm:$0xff]
    %v778 = vld [vmem:[%s3 + $0x638] sm:$0xff]
    %v779 = vld [vmem:[%s3 + $0x640] sm:$0xff]
    %v780 = vld [vmem:[%s3 + $0x648] sm:$0xff]
    %v781 = vld [vmem:[%s3 + $0x650] sm:$0xff]
    %v782 = vld [vmem:[%s3 + $0x658] sm:$0xff]
    %v783 = vld [vmem:[%s3 + $0x660] sm:$0xff]
    %v784 = vld [vmem:[%s3 + $0x668] sm:$0xff]
    %v785 = vld [vmem:[%s3 + $0x670] sm:$0xff]
    %v786 = vld [vmem:[%s3 + $0x678] sm:$0xff]
    %v787 = vld [vmem:[%s3 + $0x680] sm:$0xff]
    %v788 = vld [vmem:[%s3 + $0x688] sm:$0xff]
    %v789 = vld [vmem:[%s3 + $0x690] sm:$0xff]
    %v790 = vld [vmem:[%s3 + $0x698] sm:$0xff]
    %v791 = vld [vmem:[%s3 + $0x6a0] sm:$0xff]
    %v792 = vld [vmem:[%s3 + $0x6a8] sm:$0xff]
    %v793 = vld [vmem:[%s3 + $0x6b0] sm:$0xff]
    %v794 = vld [vmem:[%s3 + $0x6b8] sm:$0xff]
    %v795 = vld [vmem:[%s3 + $0x6c0] sm:$0xff]
    %v796 = vld [vmem:[%s3 + $0x6c8] sm:$0xff]
    %v797 = vld [vmem:[%s3 + $0x6d0] sm:$0xff]
    %v798 = vld [vmem:[%s3 + $0x6d8] sm:$0xff]
    %v799 = vld [vmem:[%s3 + $0x6e0] sm:$0xff]
    %v800 = vld [vmem:[%s3 + $0x6e8] sm:$0xff]
    %v801 = vld [vmem:[%s3 + $0x6f0] sm:$0xff]
    %v802 = vld [vmem:[%s3 + $0x6f8] sm:$0xff]
    %v803 = vld [vmem:[%s3 + $0x700] sm:$0xff]
    %v804 = vld [vmem:[%s3 + $0x708] sm:$0xff]
    %v805 = vld [vmem:[%s3 + $0x710] sm:$0xff]
    %v806 = vld [vmem:[%s3 + $0x718] sm:$0xff]
    %v807 = vld [vmem:[%s3 + $0x720] sm:$0xff]
    %v808 = vld [vmem:[%s3 + $0x728] sm:$0xff]
    %v809 = vld [vmem:[%s3 + $0x730] sm:$0xff]
    %v810 = vld [vmem:[%s3 + $0x738] sm:$0xff]
    %v811 = vld [vmem:[%s3 + $0x740] sm:$0xff]
    %v812 = vld [vmem:[%s3 + $0x748] sm:$0xff]
    %v813 = vld [vmem:[%s3 + $0x750] sm:$0xff]
    %v814 = vld [vmem:[%s3 + $0x758] sm:$0xff]
    %v815 = vld [vmem:[%s3 + $0x760] sm:$0xff]
    %v816 = vld [vmem:[%s3 + $0x768] sm:$0xff]
    %v817 = vld [vmem:[%s3 + $0x770] sm:$0xff]
    %v818 = vld [vmem:[%s3 + $0x778] sm:$0xff]
    %v819 = vld [vmem:[%s3 + $0x780] sm:$0xff]
    %v820 = vld [vmem:[%s3 + $0x788] sm:$0xff]
    %v821 = vld [vmem:[%s3 + $0x790] sm:$0xff]
    %v822 = vld [vmem:[%s3 + $0x798] sm:$0xff]
    %v823 = vld [vmem:[%s3 + $0x7a0] sm:$0xff]
    %v824 = vld [vmem:[%s3 + $0x7a8] sm:$0xff]
    %v825 = vld [vmem:[%s3 + $0x7b0] sm:$0xff]
    %v826 = vld [vmem:[%s3 + $0x7b8] sm:$0xff]
    %v827 = vld [vmem:[%s3 + $0x7c0] sm:$0xff]
    %v828 = vld [vmem:[%s3 + $0x7c8] sm:$0xff]
    %v829 = vld [vmem:[%s3 + $0x7d0] sm:$0xff]
    %v830 = vld [vmem:[%s3 + $0x7d8] sm:$0xff]
    %v831 = vld [vmem:[%s3 + $0x7e0] sm:$0xff]
    %v832 = vld [vmem:[%s3 + $0x7e8] sm:$0xff]
    %v833 = vld [vmem:[%s3 + $0x7f0] sm:$0xff]
    %v834 = vld [vmem:[%s3 + $0x7f8] sm:$0xff]
    %v835 = vld [vmem:[%s3 + $0x800] sm:$0xff]
    %v836 = vld [vmem:[%s3 + $0x808] sm:$0xff]
    %v837 = vld [vmem:[%s3 + $0x810] sm:$0xff]
    %v838 = vld [vmem:[%s3 + $0x818] sm:$0xff]
    %v839 = vld [vmem:[%s3 + $0x820] sm:$0xff]
    %v840 = vld [vmem:[%s3 + $0x828] sm:$0xff]
    %v841 = vld [vmem:[%s3 + $0x830] sm:$0xff]
    %v842 = vld [vmem:[%s3 + $0x838] sm:$0xff]
    %v843 = vld [vmem:[%s3 + $0x840] sm:$0xff]
    %v844 = vld [vmem:[%s3 + $0x848] sm:$0xff]
    %v845 = vld [vmem:[%s3 + $0x850] sm:$0xff]
    %v846 = vld [vmem:[%s3 + $0x858] sm:$0xff]
    %v847 = vld [vmem:[%s3 + $0x860] sm:$0xff]
    %v848 = vld [vmem:[%s3 + $0x868] sm:$0xff]
    %v849 = vld [vmem:[%s3 + $0x870] sm:$0xff]
    %v850 = vld [vmem:[%s3 + $0x878] sm:$0xff]
    %v851 = vld [vmem:[%s3 + $0x880] sm:$0xff]
    %v852 = vld [vmem:[%s3 + $0x888] sm:$0xff]
    %v853 = vld [vmem:[%s3 + $0x890] sm:$0xff]
    %v854 = vld [vmem:[%s3 + $0x898] sm:$0xff]
    %v855 = vld [vmem:[%s3 + $0x8a0] sm:$0xff]
    %v856 = vld [vmem:[%s3 + $0x8a8] sm:$0xff]
    %v857 = vld [vmem:[%s3 + $0x8b0] sm:$0xff]
    %v858 = vld [vmem:[%s3 + $0x8b8] sm:$0xff]
    %v859 = vld [vmem:[%s3 + $0x8c0] sm:$0xff]
    %v860 = vld [vmem:[%s3 + $0x8c8] sm:$0xff]
    %v861 = vld [vmem:[%s3 + $0x8d0] sm:$0xff]
    %v862 = vld [vmem:[%s3 + $0x8d8] sm:$0xff]
    %v863 = vld [vmem:[%s3 + $0x8e0] sm:$0xff]
    %v864 = vld [vmem:[%s3 + $0x8e8] sm:$0xff]
    %v865 = vld [vmem:[%s3 + $0x8f0] sm:$0xff]
    %v866 = vld [vmem:[%s3 + $0x8f8] sm:$0xff]
    %v867 = vld [vmem:[%s3 + $0x900] sm:$0xff]
    %v868 = vld [vmem:[%s3 + $0x908] sm:$0xff]
    %v869 = vld [vmem:[%s3 + $0x910] sm:$0xff]
    %v870 = vld [vmem:[%s3 + $0x918] sm:$0xff]
    %v871 = vld [vmem:[%s3 + $0x920] sm:$0xff]
    %v872 = vld [vmem:[%s3 + $0x928] sm:$0xff]
    %v873 = vld [vmem:[%s3 + $0x930] sm:$0xff]
    %v874 = vld [vmem:[%s3 + $0x938] sm:$0xff]
    %v875 = vld [vmem:[%s3 + $0x940] sm:$0xff]
    %v876 = vld [vmem:[%s3 + $0x948] sm:$0xff]
    %v877 = vld [vmem:[%s3 + $0x950] sm:$0xff]
    %v878 = vld [vmem:[%s3 + $0x958] sm:$0xff]
    %v879 = vld [vmem:[%s3 + $0x960] sm:$0xff]
    %v880 = vld [vmem:[%s3 + $0x968] sm:$0xff]
    %v881 = vld [vmem:[%s3 + $0x970] sm:$0xff]
    %v882 = vld [vmem:[%s3 + $0x978] sm:$0xff]
    %v883 = vld [vmem:[%s3 + $0x980] sm:$0xff]
    %v884 = vld [vmem:[%s3 + $0x988] sm:$0xff]
    %v885 = vld [vmem:[%s3 + $0x990] sm:$0xff]
    %v886 = vld [vmem:[%s3 + $0x998] sm:$0xff]
    %v887 = vld [vmem:[%s3 + $0x9a0] sm:$0xff]
    %v888 = vld [vmem:[%s3 + $0x9a8] sm:$0xff]
    %v889 = vld [vmem:[%s3 + $0x9b0] sm:$0xff]
    %v890 = vld [vmem:[%s3 + $0x9b8] sm:$0xff]
    %v891 = vld [vmem:[%s3 + $0x9c0] sm:$0xff]
    %v892 = vld [vmem:[%s3 + $0x9c8] sm:$0xff]
    %v893 = vld [vmem:[%s3 + $0x9d0] sm:$0xff]
    %v894 = vld [vmem:[%s3 + $0x9d8] sm:$0xff]
    %v895 = vld [vmem:[%s3 + $0x9e0] sm:$0xff]
    %v896 = vld [vmem:[%s3 + $0x9e8] sm:$0xff]
    %v897 = vld [vmem:[%s3 + $0x9f0] sm:$0xff]
    %v898 = vld [vmem:[%s3 + $0x9f8] sm:$0xff]
    %v899 = vld [vmem:[%s3 + $0xa00] sm:$0xff]
    %v900 = vld [vmem:[%s3 + $0xa08] sm:$0xff]
    %v901 = vld [vmem:[%s3 + $0xa10] sm:$0xff]
    %v902 = vld [vmem:[%s3 + $0xa18] sm:$0xff]
    %v903 = vld [vmem:[%s3 + $0xa20] sm:$0xff]
    %v904 = vld [vmem:[%s3 + $0xa28] sm:$0xff]
    %v905 = vld [vmem:[%s3 + $0xa30] sm:$0xff]
    %v906 = vld [vmem:[%s3 + $0xa38] sm:$0xff]
    %v907 = vld [vmem:[%s3 + $0xa40] sm:$0xff]
    %v908 = vld [vmem:[%s3 + $0xa48] sm:$0xff]
    %v909 = vld [vmem:[%s3 + $0xa50] sm:$0xff]
    %v910 = vld [vmem:[%s3 + $0xa58] sm:$0xff]
    %v911 = vld [vmem:[%s3 + $0xa60] sm:$0xff]
    %v912 = vld [vmem:[%s3 + $0xa68] sm:$0xff]
    %v913 = vld [vmem:[%s3 + $0xa70] sm:$0xff]
    %v914 = vld [vmem:[%s3 + $0xa78] sm:$0xff]
    %v915 = vld [vmem:[%s3 + $0xa80] sm:$0xff]
    %v916 = vld [vmem:[%s3 + $0xa88] sm:$0xff]
    %v917 = vld [vmem:[%s3 + $0xa90] sm:$0xff]
    %v918 = vld [vmem:[%s3 + $0xa98] sm:$0xff]
    %v919 = vld [vmem:[%s3 + $0xaa0] sm:$0xff]
    %v920 = vld [vmem:[%s3 + $0xaa8] sm:$0xff]
    %v921 = vld [vmem:[%s3 + $0xab0] sm:$0xff]
    %v922 = vld [vmem:[%s3 + $0xab8] sm:$0xff]
    %v923 = vld [vmem:[%s3 + $0xac0] sm:$0xff]
    %v924 = vld [vmem:[%s3 + $0xac8] sm:$0xff]
    %v925 = vld [vmem:[%s3 + $0xad0] sm:$0xff]
    %v926 = vld [vmem:[%s3 + $0xad8] sm:$0xff]
    %v927 = vld [vmem:[%s3 + $0xae0] sm:$0xff]
    %v928 = vld [vmem:[%s3 + $0xae8] sm:$0xff]
    %v929 = vld [vmem:[%s3 + $0xaf0] sm:$0xff]
    %v930 = vld [vmem:[%s3 + $0xaf8] sm:$0xff]
    %v931 = vld [vmem:[%s3 + $0xb00] sm:$0xff]
    %v932 = vld [vmem:[%s3 + $0xb08] sm:$0xff]
    %v933 = vld [vmem:[%s3 + $0xb10] sm:$0xff]
    %v934 = vld [vmem:[%s3 + $0xb18] sm:$0xff]
    %v935 = vld [vmem:[%s3 + $0xb20] sm:$0xff]
    %v936 = vld [vmem:[%s3 + $0xb28] sm:$0xff]
    %v937 = vld [vmem:[%s3 + $0xb30] sm:$0xff]
    %v938 = vld [vmem:[%s3 + $0xb38] sm:$0xff]
    %v939 = vld [vmem:[%s3 + $0xb40] sm:$0xff]
    %v940 = vld [vmem:[%s3 + $0xb48] sm:$0xff]
    %v941 = vld [vmem:[%s3 + $0xb50] sm:$0xff]
    %v942 = vld [vmem:[%s3 + $0xb58] sm:$0xff]
    %v943 = vld [vmem:[%s3 + $0xb60] sm:$0xff]
    %v944 = vld [vmem:[%s3 + $0xb68] sm:$0xff]
    %v945 = vld [vmem:[%s3 + $0xb70] sm:$0xff]
    %v946 = vld [vmem:[%s3 + $0xb78] sm:$0xff]
    %v947 = vld [vmem:[%s3 + $0xb80] sm:$0xff]
    %v948 = vld [vmem:[%s3 + $0xb88] sm:$0xff]
    %v949 = vld [vmem:[%s3 + $0xb90] sm:$0xff]
    %v950 = vld [vmem:[%s3 + $0xb98] sm:$0xff]
    %v951 = vld [vmem:[%s3 + $0xba0] sm:$0xff]
    %v952 = vld [vmem:[%s3 + $0xba8] sm:$0xff]
    %v953 = vld [vmem:[%s3 + $0xbb0] sm:$0xff]
    %v954 = vld [vmem:[%s3 + $0xbb8] sm:$0xff]
    %v955 = vld [vmem:[%s3 + $0xbc0] sm:$0xff]
    %v956 = vld [vmem:[%s3 + $0xbc8] sm:$0xff]
    %v957 = vld [vmem:[%s3 + $0xbd0] sm:$0xff]
    %v958 = vld [vmem:[%s3 + $0xbd8] sm:$0xff]
    %v959 = vld [vmem:[%s3 + $0xbe0] sm:$0xff]
    %v960 = vld [vmem:[%s3 + $0xbe8] sm:$0xff]
    %v961 = vld [vmem:[%s3 + $0xbf0] sm:$0xff]
    %v962 = vld [vmem:[%s3 + $0xbf8] sm:$0xff]
    %963 = vst [vmem:[#allocation1] ss:$4 sm:$0xff] %v554
    %v964 = vld.sshfl [vmem:[#allocation1] sm:$0xff pattern:$0x73625140]
    %v965 = vld.sshfl [vmem:[#allocation1 + $0x8] sm:$0xff pattern:$0x73625140]
    %v966 = vld.sshfl [vmem:[#allocation1 + $0x10] sm:$0xff pattern:$0x73625140]
    %970 = vmatpush.msra.mxu0 %v594
    %971 = vmatpush.msra.mxu0 %v593
    %972 = vmatpush.msra.mxu0 %v592
    %973 = vmatpush.msra.mxu0 %v591
    %974 = vmatpush.msra.mxu0 %v590
    %975 = vmatpush.msra.mxu0 %v589
    %976 = vmatpush.msra.mxu0 %v588
    %977 = vmatpush.msra.mxu0 %v587
    %978 = vmatpush.msra.mxu0 %v586
    %979 = vmatpush.msra.mxu0 %v585
    %980 = vmatpush.msra.mxu0 %v584
    %981 = vmatpush.msra.mxu0 %v583
    %982 = vmatpush.msra.mxu0 %v582
    %983 = vmatpush.msra.mxu0 %v581
    %984 = vmatpush.msra.mxu0 %v580
    %985 = vmatpush.msra.mxu0 %v579
    %986 = vmatmul.f32.gmra.mxu0 %v964
    %v987 = vpop.f32.mrf.mxu0
    %v988 = vadd.f32 0.0, %v987
    %989 = vdwg.mxu0
    %990 = vmatpush.msra.mxu0 %v610
    %991 = vmatpush.msra.mxu0 %v609
    %992 = vmatpush.msra.mxu0 %v608
    %993 = vmatpush.msra.mxu0 %v607
    %994 = vmatpush.msra.mxu0 %v606
    %995 = vmatpush.msra.mxu0 %v605
    %996 = vmatpush.msra.mxu0 %v604
    %997 = vmatpush.msra.mxu0 %v603
    %998 = vmatpush.msra.mxu0 %v602
    %999 = vmatpush.msra.mxu0 %v601
    %1000 = vmatpush.msra.mxu0 %v600
    %1001 = vmatpush.msra.mxu0 %v599
    %1002 = vmatpush.msra.mxu0 %v598
    %1003 = vmatpush.msra.mxu0 %v597
    %1004 = vmatpush.msra.mxu0 %v596
    %1005 = vmatpush.msra.mxu0 %v595
    %1006 = vmatmul.f32.gmra.mxu0 %v965
    %v1007 = vpop.f32.mrf.mxu0
    %v1008 = vadd.f32 %v988, %v1007
    %1009 = vdwg.mxu0
    %1010 = vmatpush.msra.mxu0 %v626
    %1011 = vmatpush.msra.mxu0 %v625
    %1012 = vmatpush.msra.mxu0 %v624
    %1013 = vmatpush.msra.mxu0 %v623
    %1014 = vmatpush.msra.mxu0 %v622
    %1015 = vmatpush.msra.mxu0 %v621
    %1016 = vmatpush.msra.mxu0 %v620
    %1017 = vmatpush.msra.mxu0 %v619
    %1018 = vmatpush.msra.mxu0 %v618
    %1019 = vmatpush.msra.mxu0 %v617
    %1020 = vmatpush.msra.mxu0 %v616
    %1021 = vmatpush.msra.mxu0 %v615
    %1022 = vmatpush.msra.mxu0 %v614
    %1023 = vmatpush.msra.mxu0 %v613
    %1024 = vmatpush.msra.mxu0 %v612
    %1025 = vmatpush.msra.mxu0 %v611
    %1026 = vmatmul.f32.gmra.mxu0 %v966
    %v1027 = vpop.f32.mrf.mxu0
    %v1028 = vadd.f32 %v1008, %v1027
    %1029 = vdwg.mxu0
    %1030 = vst [vmem:[#allocation1] ss:$4 sm:$0xff] %v559
    %v1031 = vld.sshfl [vmem:[#allocation1] sm:$0xff pattern:$0x73625140]
    %v1032 = vld.sshfl [vmem:[#allocation1 + $0x8] sm:$0xff pattern:$0x73625140]
    %v1033 = vld.sshfl [vmem:[#allocation1 + $0x10] sm:$0xff pattern:$0x73625140]
    %1037 = vmatpush.msra.mxu0 %v642
    %1038 = vmatpush.msra.mxu0 %v641
    %1039 = vmatpush.msra.mxu0 %v640
    %1040 = vmatpush.msra.mxu0 %v639
    %1041 = vmatpush.msra.mxu0 %v638
    %1042 = vmatpush.msra.mxu0 %v637
    %1043 = vmatpush.msra.mxu0 %v636
    %1044 = vmatpush.msra.mxu0 %v635
    %1045 = vmatpush.msra.mxu0 %v634
    %1046 = vmatpush.msra.mxu0 %v633
    %1047 = vmatpush.msra.mxu0 %v632
    %1048 = vmatpush.msra.mxu0 %v631
    %1049 = vmatpush.msra.mxu0 %v630
    %1050 = vmatpush.msra.mxu0 %v629
    %1051 = vmatpush.msra.mxu0 %v628
    %1052 = vmatpush.msra.mxu0 %v627
    %1053 = vmatmul.f32.gmra.mxu0 %v1031
    %v1054 = vpop.f32.mrf.mxu0
    %v1055 = vadd.f32 0.0, %v1054
    %1056 = vdwg.mxu0
    %1057 = vmatpush.msra.mxu0 %v658
    %1058 = vmatpush.msra.mxu0 %v657
    %1059 = vmatpush.msra.mxu0 %v656
    %1060 = vmatpush.msra.mxu0 %v655
    %1061 = vmatpush.msra.mxu0 %v654
    %1062 = vmatpush.msra.mxu0 %v653
    %1063 = vmatpush.msra.mxu0 %v652
    %1064 = vmatpush.msra.mxu0 %v651
    %1065 = vmatpush.msra.mxu0 %v650
    %1066 = vmatpush.msra.mxu0 %v649
    %1067 = vmatpush.msra.mxu0 %v648
    %1068 = vmatpush.msra.mxu0 %v647
    %1069 = vmatpush.msra.mxu0 %v646
    %1070 = vmatpush.msra.mxu0 %v645
    %1071 = vmatpush.msra.mxu0 %v644
    %1072 = vmatpush.msra.mxu0 %v643
    %1073 = vmatmul.f32.gmra.mxu0 %v1032
    %v1074 = vpop.f32.mrf.mxu0
    %v1075 = vadd.f32 %v1055, %v1074
    %1076 = vdwg.mxu0
    %1077 = vmatpush.msra.mxu0 %v674
    %1078 = vmatpush.msra.mxu0 %v673
    %1079 = vmatpush.msra.mxu0 %v672
    %1080 = vmatpush.msra.mxu0 %v671
    %1081 = vmatpush.msra.mxu0 %v670
    %1082 = vmatpush.msra.mxu0 %v669
    %1083 = vmatpush.msra.mxu0 %v668
    %1084 = vmatpush.msra.mxu0 %v667
    %1085 = vmatpush.msra.mxu0 %v666
    %1086 = vmatpush.msra.mxu0 %v665
    %1087 = vmatpush.msra.mxu0 %v664
    %1088 = vmatpush.msra.mxu0 %v663
    %1089 = vmatpush.msra.mxu0 %v662
    %1090 = vmatpush.msra.mxu0 %v661
    %1091 = vmatpush.msra.mxu0 %v660
    %1092 = vmatpush.msra.mxu0 %v659
    %1093 = vmatmul.f32.gmra.mxu0 %v1033
    %v1094 = vpop.f32.mrf.mxu0
    %v1095 = vadd.f32 %v1075, %v1094
    %1096 = vdwg.mxu0
    %1097 = vst [vmem:[#allocation1] ss:$4 sm:$0xff] %v563
    %v1098 = vld.sshfl [vmem:[#allocation1] sm:$0xff pattern:$0x73625140]
    %v1099 = vld.sshfl [vmem:[#allocation1 + $0x8] sm:$0xff pattern:$0x73625140]
    %v1100 = vld.sshfl [vmem:[#allocation1 + $0x10] sm:$0xff pattern:$0x73625140]
    %1104 = vmatpush.msra.mxu0 %v690
    %1105 = vmatpush.msra.mxu0 %v689
    %1106 = vmatpush.msra.mxu0 %v688
    %1107 = vmatpush.msra.mxu0 %v687
    %1108 = vmatpush.msra.mxu0 %v686
    %1109 = vmatpush.msra.mxu0 %v685
    %1110 = vmatpush.msra.mxu0 %v684
    %1111 = vmatpush.msra.mxu0 %v683
    %1112 = vmatpush.msra.mxu0 %v682
    %1113 = vmatpush.msra.mxu0 %v681
    %1114 = vmatpush.msra.mxu0 %v680
    %1115 = vmatpush.msra.mxu0 %v679
    %1116 = vmatpush.msra.mxu0 %v678
    %1117 = vmatpush.msra.mxu0 %v677
    %1118 = vmatpush.msra.mxu0 %v676
    %1119 = vmatpush.msra.mxu0 %v675
    %1120 = vmatmul.f32.gmra.mxu0 %v1098
    %v1121 = vpop.f32.mrf.mxu0
    %v1122 = vadd.f32 0.0, %v1121
    %1123 = vdwg.mxu0
    %1124 = vmatpush.msra.mxu0 %v706
    %1125 = vmatpush.msra.mxu0 %v705
    %1126 = vmatpush.msra.mxu0 %v704
    %1127 = vmatpush.msra.mxu0 %v703
    %1128 = vmatpush.msra.mxu0 %v702
    %1129 = vmatpush.msra.mxu0 %v701
    %1130 = vmatpush.msra.mxu0 %v700
    %1131 = vmatpush.msra.mxu0 %v699
    %1132 = vmatpush.msra.mxu0 %v698
    %1133 = vmatpush.msra.mxu0 %v697
    %1134 = vmatpush.msra.mxu0 %v696
    %1135 = vmatpush.msra.mxu0 %v695
    %1136 = vmatpush.msra.mxu0 %v694
    %1137 = vmatpush.msra.mxu0 %v693
    %1138 = vmatpush.msra.mxu0 %v692
    %1139 = vmatpush.msra.mxu0 %v691
    %1140 = vmatmul.f32.gmra.mxu0 %v1099
    %v1141 = vpop.f32.mrf.mxu0
    %v1142 = vadd.f32 %v1122, %v1141
    %1143 = vdwg.mxu0
    %1144 = vmatpush.msra.mxu0 %v722
    %1145 = vmatpush.msra.mxu0 %v721
    %1146 = vmatpush.msra.mxu0 %v720
    %1147 = vmatpush.msra.mxu0 %v719
    %1148 = vmatpush.msra.mxu0 %v718
    %1149 = vmatpush.msra.mxu0 %v717
    %1150 = vmatpush.msra.mxu0 %v716
    %1151 = vmatpush.msra.mxu0 %v715
    %1152 = vmatpush.msra.mxu0 %v714
    %1153 = vmatpush.msra.mxu0 %v713
    %1154 = vmatpush.msra.mxu0 %v712
    %1155 = vmatpush.msra.mxu0 %v711
    %1156 = vmatpush.msra.mxu0 %v710
    %1157 = vmatpush.msra.mxu0 %v709
    %1158 = vmatpush.msra.mxu0 %v708
    %1159 = vmatpush.msra.mxu0 %v707
    %1160 = vmatmul.f32.gmra.mxu0 %v1100
    %v1161 = vpop.f32.mrf.mxu0
    %v1162 = vadd.f32 %v1142, %v1161
    %1163 = vdwg.mxu0
    %1164 = vst [vmem:[#allocation1] ss:$4 sm:$0xff] %v567
    %v1165 = vld.sshfl [vmem:[#allocation1] sm:$0xff pattern:$0x73625140]
    %v1166 = vld.sshfl [vmem:[#allocation1 + $0x8] sm:$0xff pattern:$0x73625140]
    %v1167 = vld.sshfl [vmem:[#allocation1 + $0x10] sm:$0xff pattern:$0x73625140]
    %1171 = vmatpush.msra.mxu0 %v738
    %1172 = vmatpush.msra.mxu0 %v737
    %1173 = vmatpush.msra.mxu0 %v736
    %1174 = vmatpush.msra.mxu0 %v735
    %1175 = vmatpush.msra.mxu0 %v734
    %1176 = vmatpush.msra.mxu0 %v733
    %1177 = vmatpush.msra.mxu0 %v732
    %1178 = vmatpush.msra.mxu0 %v731
    %1179 = vmatpush.msra.mxu0 %v730
    %1180 = vmatpush.msra.mxu0 %v729
    %1181 = vmatpush.msra.mxu0 %v728
    %1182 = vmatpush.msra.mxu0 %v727
    %1183 = vmatpush.msra.mxu0 %v726
    %1184 = vmatpush.msra.mxu0 %v725
    %1185 = vmatpush.msra.mxu0 %v724
    %1186 = vmatpush.msra.mxu0 %v723
    %1187 = vmatmul.f32.gmra.mxu0 %v1165
    %v1188 = vpop.f32.mrf.mxu0
    %v1189 = vadd.f32 0.0, %v1188
    %1190 = vdwg.mxu0
    %1191 = vmatpush.msra.mxu0 %v754
    %1192 = vmatpush.msra.mxu0 %v753
    %1193 = vmatpush.msra.mxu0 %v752
    %1194 = vmatpush.msra.mxu0 %v751
    %1195 = vmatpush.msra.mxu0 %v750
    %1196 = vmatpush.msra.mxu0 %v749
    %1197 = vmatpush.msra.mxu0 %v748
    %1198 = vmatpush.msra.mxu0 %v747
    %1199 = vmatpush.msra.mxu0 %v746
    %1200 = vmatpush.msra.mxu0 %v745
    %1201 = vmatpush.msra.mxu0 %v744
    %1202 = vmatpush.msra.mxu0 %v743
    %1203 = vmatpush.msra.mxu0 %v742
    %1204 = vmatpush.msra.mxu0 %v741
    %1205 = vmatpush.msra.mxu0 %v740
    %1206 = vmatpush.msra.mxu0 %v739
    %1207 = vmatmul.f32.gmra.mxu0 %v1166
    %v1208 = vpop.f32.mrf.mxu0
    %v1209 = vadd.f32 %v1189, %v1208
    %1210 = vdwg.mxu0
    %1211 = vmatpush.msra.mxu0 %v770
    %1212 = vmatpush.msra.mxu0 %v769
    %1213 = vmatpush.msra.mxu0 %v768
    %1214 = vmatpush.msra.mxu0 %v767
    %1215 = vmatpush.msra.mxu0 %v766
    %1216 = vmatpush.msra.mxu0 %v765
    %1217 = vmatpush.msra.mxu0 %v764
    %1218 = vmatpush.msra.mxu0 %v763
    %1219 = vmatpush.msra.mxu0 %v762
    %1220 = vmatpush.msra.mxu0 %v761
    %1221 = vmatpush.msra.mxu0 %v760
    %1222 = vmatpush.msra.mxu0 %v759
    %1223 = vmatpush.msra.mxu0 %v758
    %1224 = vmatpush.msra.mxu0 %v757
    %1225 = vmatpush.msra.mxu0 %v756
    %1226 = vmatpush.msra.mxu0 %v755
    %1227 = vmatmul.f32.gmra.mxu0 %v1167
    %v1228 = vpop.f32.mrf.mxu0
    %v1229 = vadd.f32 %v1209, %v1228
    %1230 = vdwg.mxu0
    %1231 = vst [vmem:[#allocation1] ss:$4 sm:$0xff] %v569
    %v1232 = vld.sshfl [vmem:[#allocation1] sm:$0xff pattern:$0x73625140]
    %v1233 = vld.sshfl [vmem:[#allocation1 + $0x8] sm:$0xff pattern:$0x73625140]
    %v1234 = vld.sshfl [vmem:[#allocation1 + $0x10] sm:$0xff pattern:$0x73625140]
    %1238 = vmatpush.msra.mxu0 %v786
    %1239 = vmatpush.msra.mxu0 %v785
    %1240 = vmatpush.msra.mxu0 %v784
    %1241 = vmatpush.msra.mxu0 %v783
    %1242 = vmatpush.msra.mxu0 %v782
    %1243 = vmatpush.msra.mxu0 %v781
    %1244 = vmatpush.msra.mxu0 %v780
    %1245 = vmatpush.msra.mxu0 %v779
    %1246 = vmatpush.msra.mxu0 %v778
    %1247 = vmatpush.msra.mxu0 %v777
    %1248 = vmatpush.msra.mxu0 %v776
    %1249 = vmatpush.msra.mxu0 %v775
    %1250 = vmatpush.msra.mxu0 %v774
    %1251 = vmatpush.msra.mxu0 %v773
    %1252 = vmatpush.msra.mxu0 %v772
    %1253 = vmatpush.msra.mxu0 %v771
    %1254 = vmatmul.f32.gmra.mxu0 %v1232
    %v1255 = vpop.f32.mrf.mxu0
    %v1256 = vadd.f32 0.0, %v1255
    %1257 = vdwg.mxu0
    %1258 = vmatpush.msra.mxu0 %v802
    %1259 = vmatpush.msra.mxu0 %v801
    %1260 = vmatpush.msra.mxu0 %v800
    %1261 = vmatpush.msra.mxu0 %v799
    %1262 = vmatpush.msra.mxu0 %v798
    %1263 = vmatpush.msra.mxu0 %v797
    %1264 = vmatpush.msra.mxu0 %v796
    %1265 = vmatpush.msra.mxu0 %v795
    %1266 = vmatpush.msra.mxu0 %v794
    %1267 = vmatpush.msra.mxu0 %v793
    %1268 = vmatpush.msra.mxu0 %v792
    %1269 = vmatpush.msra.mxu0 %v791
    %1270 = vmatpush.msra.mxu0 %v790
    %1271 = vmatpush.msra.mxu0 %v789
    %1272 = vmatpush.msra.mxu0 %v788
    %1273 = vmatpush.msra.mxu0 %v787
    %1274 = vmatmul.f32.gmra.mxu0 %v1233
    %v1275 = vpop.f32.mrf.mxu0
    %v1276 = vadd.f32 %v1256, %v1275
    %1277 = vdwg.mxu0
    %1278 = vmatpush.msra.mxu0 %v818
    %1279 = vmatpush.msra.mxu0 %v817
    %1280 = vmatpush.msra.mxu0 %v816
    %1281 = vmatpush.msra.mxu0 %v815
    %1282 = vmatpush.msra.mxu0 %v814
    %1283 = vmatpush.msra.mxu0 %v813
    %1284 = vmatpush.msra.mxu0 %v812
    %1285 = vmatpush.msra.mxu0 %v811
    %1286 = vmatpush.msra.mxu0 %v810
    %1287 = vmatpush.msra.mxu0 %v809
    %1288 = vmatpush.msra.mxu0 %v808
    %1289 = vmatpush.msra.mxu0 %v807
    %1290 = vmatpush.msra.mxu0 %v806
    %1291 = vmatpush.msra.mxu0 %v805
    %1292 = vmatpush.msra.mxu0 %v804
    %1293 = vmatpush.msra.mxu0 %v803
    %1294 = vmatmul.f32.gmra.mxu0 %v1234
    %v1295 = vpop.f32.mrf.mxu0
    %v1296 = vadd.f32 %v1276, %v1295
    %1297 = vdwg.mxu0
    %1298 = vst [vmem:[#allocation1] ss:$4 sm:$0xff] %v572
    %v1299 = vld.sshfl [vmem:[#allocation1] sm:$0xff pattern:$0x73625140]
    %v1300 = vld.sshfl [vmem:[#allocation1 + $0x8] sm:$0xff pattern:$0x73625140]
    %v1301 = vld.sshfl [vmem:[#allocation1 + $0x10] sm:$0xff pattern:$0x73625140]
    %1305 = vmatpush.msra.mxu0 %v834
    %1306 = vmatpush.msra.mxu0 %v833
    %1307 = vmatpush.msra.mxu0 %v832
    %1308 = vmatpush.msra.mxu0 %v831
    %1309 = vmatpush.msra.mxu0 %v830
    %1310 = vmatpush.msra.mxu0 %v829
    %1311 = vmatpush.msra.mxu0 %v828
    %1312 = vmatpush.msra.mxu0 %v827
    %1313 = vmatpush.msra.mxu0 %v826
    %1314 = vmatpush.msra.mxu0 %v825
    %1315 = vmatpush.msra.mxu0 %v824
    %1316 = vmatpush.msra.mxu0 %v823
    %1317 = vmatpush.msra.mxu0 %v822
    %1318 = vmatpush.msra.mxu0 %v821
    %1319 = vmatpush.msra.mxu0 %v820
    %1320 = vmatpush.msra.mxu0 %v819
    %1321 = vmatmul.f32.gmra.mxu0 %v1299
    %v1322 = vpop.f32.mrf.mxu0
    %v1323 = vadd.f32 0.0, %v1322
    %1324 = vdwg.mxu0
    %1325 = vmatpush.msra.mxu0 %v850
    %1326 = vmatpush.msra.mxu0 %v849
    %1327 = vmatpush.msra.mxu0 %v848
    %1328 = vmatpush.msra.mxu0 %v847
    %1329 = vmatpush.msra.mxu0 %v846
    %1330 = vmatpush.msra.mxu0 %v845
    %1331 = vmatpush.msra.mxu0 %v844
    %1332 = vmatpush.msra.mxu0 %v843
    %1333 = vmatpush.msra.mxu0 %v842
    %1334 = vmatpush.msra.mxu0 %v841
    %1335 = vmatpush.msra.mxu0 %v840
    %1336 = vmatpush.msra.mxu0 %v839
    %1337 = vmatpush.msra.mxu0 %v838
    %1338 = vmatpush.msra.mxu0 %v837
    %1339 = vmatpush.msra.mxu0 %v836
    %1340 = vmatpush.msra.mxu0 %v835
    %1341 = vmatmul.f32.gmra.mxu0 %v1300
    %v1342 = vpop.f32.mrf.mxu0
    %v1343 = vadd.f32 %v1323, %v1342
    %1344 = vdwg.mxu0
    %1345 = vmatpush.msra.mxu0 %v866
    %1346 = vmatpush.msra.mxu0 %v865
    %1347 = vmatpush.msra.mxu0 %v864
    %1348 = vmatpush.msra.mxu0 %v863
    %1349 = vmatpush.msra.mxu0 %v862
    %1350 = vmatpush.msra.mxu0 %v861
    %1351 = vmatpush.msra.mxu0 %v860
    %1352 = vmatpush.msra.mxu0 %v859
    %1353 = vmatpush.msra.mxu0 %v858
    %1354 = vmatpush.msra.mxu0 %v857
    %1355 = vmatpush.msra.mxu0 %v856
    %1356 = vmatpush.msra.mxu0 %v855
    %1357 = vmatpush.msra.mxu0 %v854
    %1358 = vmatpush.msra.mxu0 %v853
    %1359 = vmatpush.msra.mxu0 %v852
    %1360 = vmatpush.msra.mxu0 %v851
    %1361 = vmatmul.f32.gmra.mxu0 %v1301
    %v1362 = vpop.f32.mrf.mxu0
    %v1363 = vadd.f32 %v1343, %v1362
    %1364 = vdwg.mxu0
    %1365 = vst [vmem:[#allocation1] ss:$4 sm:$0xff] %v575
    %v1366 = vld.sshfl [vmem:[#allocation1] sm:$0xff pattern:$0x73625140]
    %v1367 = vld.sshfl [vmem:[#allocation1 + $0x8] sm:$0xff pattern:$0x73625140]
    %v1368 = vld.sshfl [vmem:[#allocation1 + $0x10] sm:$0xff pattern:$0x73625140]
    %1372 = vmatpush.msra.mxu0 %v882
    %1373 = vmatpush.msra.mxu0 %v881
    %1374 = vmatpush.msra.mxu0 %v880
    %1375 = vmatpush.msra.mxu0 %v879
    %1376 = vmatpush.msra.mxu0 %v878
    %1377 = vmatpush.msra.mxu0 %v877
    %1378 = vmatpush.msra.mxu0 %v876
    %1379 = vmatpush.msra.mxu0 %v875
    %1380 = vmatpush.msra.mxu0 %v874
    %1381 = vmatpush.msra.mxu0 %v873
    %1382 = vmatpush.msra.mxu0 %v872
    %1383 = vmatpush.msra.mxu0 %v871
    %1384 = vmatpush.msra.mxu0 %v870
    %1385 = vmatpush.msra.mxu0 %v869
    %1386 = vmatpush.msra.mxu0 %v868
    %1387 = vmatpush.msra.mxu0 %v867
    %1388 = vmatmul.f32.gmra.mxu0 %v1366
    %v1389 = vpop.f32.mrf.mxu0
    %v1390 = vadd.f32 0.0, %v1389
    %1391 = vdwg.mxu0
    %1392 = vmatpush.msra.mxu0 %v898
    %1393 = vmatpush.msra.mxu0 %v897
    %1394 = vmatpush.msra.mxu0 %v896
    %1395 = vmatpush.msra.mxu0 %v895
    %1396 = vmatpush.msra.mxu0 %v894
    %1397 = vmatpush.msra.mxu0 %v893
    %1398 = vmatpush.msra.mxu0 %v892
    %1399 = vmatpush.msra.mxu0 %v891
    %1400 = vmatpush.msra.mxu0 %v890
    %1401 = vmatpush.msra.mxu0 %v889
    %1402 = vmatpush.msra.mxu0 %v888
    %1403 = vmatpush.msra.mxu0 %v887
    %1404 = vmatpush.msra.mxu0 %v886
    %1405 = vmatpush.msra.mxu0 %v885
    %1406 = vmatpush.msra.mxu0 %v884
    %1407 = vmatpush.msra.mxu0 %v883
    %1408 = vmatmul.f32.gmra.mxu0 %v1367
    %v1409 = vpop.f32.mrf.mxu0
    %v1410 = vadd.f32 %v1390, %v1409
    %1411 = vdwg.mxu0
    %1412 = vmatpush.msra.mxu0 %v914
    %1413 = vmatpush.msra.mxu0 %v913
    %1414 = vmatpush.msra.mxu0 %v912
    %1415 = vmatpush.msra.mxu0 %v911
    %1416 = vmatpush.msra.mxu0 %v910
    %1417 = vmatpush.msra.mxu0 %v909
    %1418 = vmatpush.msra.mxu0 %v908
    %1419 = vmatpush.msra.mxu0 %v907
    %1420 = vmatpush.msra.mxu0 %v906
    %1421 = vmatpush.msra.mxu0 %v905
    %1422 = vmatpush.msra.mxu0 %v904
    %1423 = vmatpush.msra.mxu0 %v903
    %1424 = vmatpush.msra.mxu0 %v902
    %1425 = vmatpush.msra.mxu0 %v901
    %1426 = vmatpush.msra.mxu0 %v900
    %1427 = vmatpush.msra.mxu0 %v899
    %1428 = vmatmul.f32.gmra.mxu0 %v1368
    %v1429 = vpop.f32.mrf.mxu0
    %v1430 = vadd.f32 %v1410, %v1429
    %1431 = vdwg.mxu0
    %1432 = vst [vmem:[#allocation1] ss:$4 sm:$0xff] %v578
    %v1433 = vld.sshfl [vmem:[#allocation1] sm:$0xff pattern:$0x73625140]
    %v1434 = vld.sshfl [vmem:[#allocation1 + $0x8] sm:$0xff pattern:$0x73625140]
    %v1435 = vld.sshfl [vmem:[#allocation1 + $0x10] sm:$0xff pattern:$0x73625140]
    %1439 = vmatpush.msra.mxu0 %v930
    %1440 = vmatpush.msra.mxu0 %v929
    %1441 = vmatpush.msra.mxu0 %v928
    %1442 = vmatpush.msra.mxu0 %v927
    %1443 = vmatpush.msra.mxu0 %v926
    %1444 = vmatpush.msra.mxu0 %v925
    %1445 = vmatpush.msra.mxu0 %v924
    %1446 = vmatpush.msra.mxu0 %v923
    %1447 = vmatpush.msra.mxu0 %v922
    %1448 = vmatpush.msra.mxu0 %v921
    %1449 = vmatpush.msra.mxu0 %v920
    %1450 = vmatpush.msra.mxu0 %v919
    %1451 = vmatpush.msra.mxu0 %v918
    %1452 = vmatpush.msra.mxu0 %v917
    %1453 = vmatpush.msra.mxu0 %v916
    %1454 = vmatpush.msra.mxu0 %v915
    %1455 = vmatmul.f32.gmra.mxu0 %v1433
    %v1456 = vpop.f32.mrf.mxu0
    %v1457 = vadd.f32 0.0, %v1456
    %1458 = vdwg.mxu0
    %1459 = vmatpush.msra.mxu0 %v946
    %1460 = vmatpush.msra.mxu0 %v945
    %1461 = vmatpush.msra.mxu0 %v944
    %1462 = vmatpush.msra.mxu0 %v943
    %1463 = vmatpush.msra.mxu0 %v942
    %1464 = vmatpush.msra.mxu0 %v941
    %1465 = vmatpush.msra.mxu0 %v940
    %1466 = vmatpush.msra.mxu0 %v939
    %1467 = vmatpush.msra.mxu0 %v938
    %1468 = vmatpush.msra.mxu0 %v937
    %1469 = vmatpush.msra.mxu0 %v936
    %1470 = vmatpush.msra.mxu0 %v935
    %1471 = vmatpush.msra.mxu0 %v934
    %1472 = vmatpush.msra.mxu0 %v933
    %1473 = vmatpush.msra.mxu0 %v932
    %1474 = vmatpush.msra.mxu0 %v931
    %1475 = vmatmul.f32.gmra.mxu0 %v1434
    %v1476 = vpop.f32.mrf.mxu0
    %v1477 = vadd.f32 %v1457, %v1476
    %1478 = vdwg.mxu0
    %1479 = vmatpush.msra.mxu0 %v962
    %1480 = vmatpush.msra.mxu0 %v961
    %1481 = vmatpush.msra.mxu0 %v960
    %1482 = vmatpush.msra.mxu0 %v959
    %1483 = vmatpush.msra.mxu0 %v958
    %1484 = vmatpush.msra.mxu0 %v957
    %1485 = vmatpush.msra.mxu0 %v956
    %1486 = vmatpush.msra.mxu0 %v955
    %1487 = vmatpush.msra.mxu0 %v954
    %1488 = vmatpush.msra.mxu0 %v953
    %1489 = vmatpush.msra.mxu0 %v952
    %1490 = vmatpush.msra.mxu0 %v951
    %1491 = vmatpush.msra.mxu0 %v950
    %1492 = vmatpush.msra.mxu0 %v949
    %1493 = vmatpush.msra.mxu0 %v948
    %1494 = vmatpush.msra.mxu0 %v947
    %1495 = vmatmul.f32.gmra.mxu0 %v1435
    %v1496 = vpop.f32.mrf.mxu0
    %v1497 = vadd.f32 %v1477, %v1496
    %1498 = vdwg.mxu0
    %vm1499 = vcmask 33792
    %v1500 = vsel %vm1499, %v1028, 0.0
    %v1501 = vsel %vm1499, %v1095, 0.0
    %v1502 = vadd.f32 %v1500, %v1501
    %v1503 = vsel %vm1499, %v1162, 0.0
    %v1504 = vadd.f32 %v1502, %v1503
    %v1505 = vsel %vm1499, %v1229, 0.0
    %v1506 = vadd.f32 %v1504, %v1505
    %v1507 = vsel %vm1499, %v1296, 0.0
    %v1508 = vadd.f32 %v1506, %v1507
    %v1509 = vsel %vm1499, %v1363, 0.0
    %v1510 = vadd.f32 %v1508, %v1509
    %v1511 = vsel %vm1499, %v1430, 0.0
    %v1512 = vadd.f32 %v1510, %v1511
    %v1513 = vsel %vm1499, %v1497, 0.0
    %v1514 = vadd.f32 %v1512, %v1513
    %v1515 = vld [vmem:[%s4] sm:$0x1]
    %v1517 = vperm.slane %v1515, 0
    %v1519 = vadd.f32 %v1514, %v1517
    %vm1520 = vcmask 25600
    %1521 = vst.msk [vmem:[#allocation2] sm:$0x3] %vm1520, %v1519
    %v1522 = vtanh.pop %v1519
    %1524 = vrot.lane.b32.xlu0 %v1522, 124
    %v1525 = vpop.permute.xlu0 %1524
    %vm1527 = vcmask 1024
    %1528 = vst.msk [vmem:[%s6] sm:$0x3] %vm1527, %v1525
    // Predicated region
    $region22: #{model_wrapper_forward.1} parent=1 // pred_check
      _
    $region23: #{model_wrapper_forward.1} parent=1 // pred_check_branch
      %1530 = sbr.rel (0) target = $region25
    $region24: #{model_wrapper_forward.1} parent=1 // pred_region
      %1532 = vsyncadd [#allocation3], 0
      %s1534 = sshll.u32 [#allocation2], 4
      %s1535 = int_to_ptr.vmem [resolvable:$true] %s1534
      %s1536 = sshll.u32 %s5, 4
      %s1537 = int_to_ptr.hbm [resolvable:$true] %s1536
      %1539 = dma.vmem_to_hbm [thread:$0]  %s1535, 32, %s1537, [#allocation3]
    $region25: #{model_wrapper_forward.1} parent=1 // pred_fallthru
      _
    // Predicated region
    $region26: #{model_wrapper_forward.1} parent=1 // pred_check
      _
    $region27: #{model_wrapper_forward.1} parent=1 // pred_check_branch
      %1541 = sbr.rel (0) target = $region29
    $region28: #{model_wrapper_forward.1} parent=1 // pred_region
      _
    $region29: #{model_wrapper_forward.1} parent=1 // pred_fallthru
      _
    // Predicated region
    $region30: #{model_wrapper_forward.1} parent=1 // pred_check
      _
    $region31: #{model_wrapper_forward.1} parent=1 // pred_check_branch
      %1543 = sbr.rel (0) target = $region33
    $region32: #{model_wrapper_forward.1} parent=1 // pred_region
      %1545 = dma.done [#allocation3], 32
    $region33: #{model_wrapper_forward.1} parent=1 // pred_fallthru
      _
    // Predicated region
    $region34: #{model_wrapper_forward.1} parent=1 // pred_check
      _
    $region35: #{model_wrapper_forward.1} parent=1 // pred_check_branch
      %1547 = sbr.rel (0) target = $region37
    $region36: #{model_wrapper_forward.1} parent=1 // pred_region
      _
    $region37: #{model_wrapper_forward.1} parent=1 // pred_fallthru
      _
    %1548 = vsyncpa [#allocation3], 1

</llo_original>
